<compile_context>
chip_gen: v6e
topology: v6e:2x2x1
jax: 0.10.0
libtpu: 0.0.40
codegen_flags: <defaults>
</compile_context>

<pallas_src>
import functools

import jax
import jax.numpy as jnp
from jax.experimental import pallas as pl
from jax.experimental.pallas import tpu as pltpu

_BN_EPS = 1e-5
_LANES = 128
_VMEM_LIMIT = 32 * 1024 * 1024
_DEFAULT_TILE_M = 256


def _round_up(x, m):
    return (x + m - 1) // m * m


def _pad2(a, rows, cols):
    return jnp.pad(a, ((0, rows - a.shape[0]), (0, cols - a.shape[1])))


# ----------------------------- Pallas kernels --------------------------------

def _matmul_stats_kernel(p_ref, w_ref, y_ref, s_ref, q_ref):
    """y = patches @ W (bf16 operands, f32 acc); accumulate channel sum/sumsq."""
    @pl.when(pl.program_id(0) == 0)
    def _init():
        s_ref[...] = jnp.zeros_like(s_ref)
        q_ref[...] = jnp.zeros_like(q_ref)

    y = jnp.dot(p_ref[...], w_ref[...], preferred_element_type=jnp.float32)
    y_ref[...] = y
    s_ref[...] += jnp.sum(y, axis=0, keepdims=True)
    q_ref[...] += jnp.sum(y * y, axis=0, keepdims=True)


def _bn_relu_kernel(y_ref, sc_ref, sh_ref, o_ref):
    """out = relu(y * scale + shift)  (BN folded to one FMA)."""
    o_ref[...] = jnp.maximum(y_ref[...] * sc_ref[...] + sh_ref[...], 0.0
                             ).astype(o_ref.dtype)


def _bn_res_relu_kernel(y_ref, sc_ref, sh_ref, r_ref, rsc_ref, rsh_ref, o_ref):
    """out = relu(y*scale + shift + r*rscale + rshift)  (BN2 + shortcut BN + add)."""
    out = y_ref[...] * sc_ref[...] + sh_ref[...]
    out = out + r_ref[...] * rsc_ref[...] + rsh_ref[...]
    o_ref[...] = jnp.maximum(out, 0.0).astype(o_ref.dtype)


# ----------------------------- pallas_call wrappers ---------------------------

def _matmul_stats(patches, w_mat, tile_m):
    mp, kp = patches.shape
    c = w_mat.shape[1]
    steps = mp // tile_m
    return pl.pallas_call(
        _matmul_stats_kernel,
        grid=(steps,),
        in_specs=[
            pl.BlockSpec((tile_m, kp), lambda i: (i, 0)),
            pl.BlockSpec((kp, c), lambda i: (0, 0)),        # weights stay in VMEM
        ],
        out_specs=[
            pl.BlockSpec((tile_m, c), lambda i: (i, 0)),
            pl.BlockSpec((1, c), lambda i: (0, 0)),          # sum accumulator
            pl.BlockSpec((1, c), lambda i: (0, 0)),          # sumsq accumulator
        ],
        out_shape=[
            jax.ShapeDtypeStruct((mp, c), jnp.float32),
            jax.ShapeDtypeStruct((1, c), jnp.float32),
            jax.ShapeDtypeStruct((1, c), jnp.float32),
        ],
        compiler_params=pltpu.CompilerParams(
            dimension_semantics=("arbitrary",),              # stats revisit across M
            vmem_limit_bytes=_VMEM_LIMIT),
    )(patches, w_mat)


def _bn_relu(y, scale, shift, tile_m, c_out):
    mp = y.shape[0]
    return pl.pallas_call(
        _bn_relu_kernel,
        grid=(mp // tile_m,),
        in_specs=[
            pl.BlockSpec((tile_m, c_out), lambda i: (i, 0)),
            pl.BlockSpec((1, c_out), lambda i: (0, 0)),
            pl.BlockSpec((1, c_out), lambda i: (0, 0)),
        ],
        out_specs=pl.BlockSpec((tile_m, c_out), lambda i: (i, 0)),
        out_shape=jax.ShapeDtypeStruct((mp, c_out), jnp.float32),
        compiler_params=pltpu.CompilerParams(
            dimension_semantics=("parallel",),
            vmem_limit_bytes=_VMEM_LIMIT),
    )(y, scale, shift)


def _bn_res_relu(y, scale, shift, resid, rscale, rshift, r_col, tile_m, c_out):
    mp = y.shape[0]
    return pl.pallas_call(
        _bn_res_relu_kernel,
        grid=(mp // tile_m,),
        in_specs=[
            pl.BlockSpec((tile_m, c_out), lambda i: (i, 0)),
            pl.BlockSpec((1, c_out), lambda i: (0, 0)),
            pl.BlockSpec((1, c_out), lambda i: (0, 0)),
            pl.BlockSpec((tile_m, c_out), lambda i: (i, r_col)),
            pl.BlockSpec((1, c_out), lambda i: (0, 0)),
            pl.BlockSpec((1, c_out), lambda i: (0, 0)),
        ],
        out_specs=pl.BlockSpec((tile_m, c_out), lambda i: (i, 0)),
        out_shape=jax.ShapeDtypeStruct((mp, c_out), jnp.float32),
        compiler_params=pltpu.CompilerParams(
            dimension_semantics=("parallel",),
            vmem_limit_bytes=_VMEM_LIMIT),
    )(y, scale, shift, resid, rscale, rshift)


# ----------------------------- XLA glue ---------------------------------------

def _im2col(x_padded, k, stride):
    """(N, Hp, Wp, C) padded NHWC -> (N*Ho*Wo, k*k*C) patch matrix."""
    n, hp, wp, c = x_padded.shape
    ho = (hp - k) // stride + 1
    wo = (wp - k) // stride + 1
    cols = []
    for kh in range(k):
        for kw in range(k):
            cols.append(
                x_padded[:, kh:kh + stride * (ho - 1) + 1:stride,
                            kw:kw + stride * (wo - 1) + 1:stride, :])
    patches = jnp.concatenate(cols, axis=-1)
    return patches.reshape(n * ho * wo, k * k * c), ho, wo


def _w_to_mat(w):
    """PyTorch conv weight (Cout, Cin, KH, KW) -> matmul weight (KH*KW*Cin, Cout)."""
    cout, cin, kh, kw = w.shape
    return jnp.transpose(w, (2, 3, 1, 0)).reshape(kh * kw * cin, cout)


def _bn_fold(s, q, count, gamma, beta):
    """Fold batch-stat BN into per-channel (scale, shift)."""
    mean = s / count
    var = jnp.maximum(q / count - mean * mean, 0.0)
    scale = gamma * jax.lax.rsqrt(var + _BN_EPS)
    shift = beta - mean * scale
    return scale, shift


def init_basic_block(key, in_planes, planes, stride):
    k1, k2, k3 = jax.random.split(key, 3)
    params = {
        "w1": jax.random.normal(k1, (planes, in_planes, 3, 3), jnp.float32) * 0.1,
        "g1": jnp.ones((1, planes), jnp.float32),
        "b1": jnp.zeros((1, planes), jnp.float32),
        "w2": jax.random.normal(k2, (planes, planes, 3, 3), jnp.float32) * 0.1,
        "g2": jnp.ones((1, planes), jnp.float32),
        "b2": jnp.zeros((1, planes), jnp.float32),
    }
    if stride != 1 or in_planes != planes:
        params["ws"] = jax.random.normal(k3, (planes, in_planes, 1, 1), jnp.float32) * 0.1
        params["gs"] = jnp.ones((1, planes), jnp.float32)
        params["bs"] = jnp.zeros((1, planes), jnp.float32)
    return params


@functools.partial(jax.jit, static_argnames=("stride",))
def basic_block_forward(x_nchw, params, *, stride):
    x = jnp.transpose(x_nchw, (0, 2, 3, 1)).astype(jnp.float32)   # NCHW -> NHWC
    n, h, w, cin = x.shape
    planes = params["w1"].shape[0]
    cp = _round_up(planes, _LANES)
    has_proj = (stride != 1) or (cin != planes)

    # ---- conv1 (3x3, stride, pad=1)  [+ fused 1x1/stride projection shortcut] ----
    xp = jnp.pad(x, ((0, 0), (1, 1), (1, 1), (0, 0)))
    p1, ho, wo = _im2col(xp, 3, stride)
    m = n * ho * wo
    tile = min(_DEFAULT_TILE_M, _round_up(m, 16))
    mp = _round_up(m, tile)
    k1p = _round_up(9 * cin, _LANES)
    p1 = _pad2(p1, mp, k1p).astype(jnp.bfloat16)

    w1 = _pad2(_w_to_mat(params["w1"]), k1p, cp)
    if has_proj:
        # The 1x1/stride shortcut reads exactly the centre tap of the 3x3 patches,
        # so its weight becomes extra output columns of the same matmul.
        ws = jnp.zeros((k1p, cp), jnp.float32)
        ws = ws.at[4 * cin:5 * cin, :planes].set(_w_to_mat(params["ws"]))
        wcat = jnp.concatenate([w1, ws], axis=1)
    else:
        wcat = w1
    y1, s1, q1 = _matmul_stats(p1, wcat.astype(jnp.bfloat16), tile)

    count = jnp.float32(m)
    sc1, sh1 = _bn_fold(s1[:, :cp], q1[:, :cp], count,
                        _pad2(params["g1"], 1, cp), _pad2(params["b1"], 1, cp))
    out1 = _bn_relu(y1, sc1, sh1, tile, cp)                        # (mp, cp) f32

    # ---- conv2 (3x3, stride=1, pad=1) ----
    o1 = out1[:m, :planes].reshape(n, ho, wo, planes)
    o1p = jnp.pad(o1, ((0, 0), (1, 1), (1, 1), (0, 0)))
    p2, _, _ = _im2col(o1p, 3, 1)
    k2p = _round_up(9 * planes, _LANES)
    p2 = _pad2(p2, mp, k2p).astype(jnp.bfloat16)
    w2 = _pad2(_w_to_mat(params["w2"]), k2p, cp).astype(jnp.bfloat16)
    y2, s2, q2 = _matmul_stats(p2, w2, tile)
    sc2, sh2 = _bn_fold(s2, q2, count,
                        _pad2(params["g2"], 1, cp), _pad2(params["b2"], 1, cp))

    # ---- residual branch, fused into the conv2 epilogue kernel ----
    if has_proj:
        resid, r_col = y1, 1                     # pre-BN shortcut activations (cols cp:2cp)
        rsc, rsh = _bn_fold(s1[:, cp:], q1[:, cp:], count,
                            _pad2(params["gs"], 1, cp), _pad2(params["bs"], 1, cp))
    else:
        resid, r_col = _pad2(x.reshape(m, cin), mp, cp), 0         # identity
        rsc = jnp.ones((1, cp), jnp.float32)
        rsh = jnp.zeros((1, cp), jnp.float32)

    out2 = _bn_res_relu(y2, sc2, sh2, resid, rsc, rsh, r_col, tile, cp)
    out = out2[:m, :planes].reshape(n, ho, wo, planes)
    return jnp.transpose(out, (0, 3, 1, 2))                        # NHWC -> NCHW


# ----------------------------- reference & test -------------------------------

def _ref_forward(x, params, stride):
    """Pure-JAX reference (matched bf16-operand / f32-accumulate precision)."""
    def q(a):
        return a.astype(jnp.bfloat16).astype(jnp.float32)

    def conv(x, w, s, pad):
        return jax.lax.conv_general_dilated(
            q(x), q(w), (s, s), [(pad, pad), (pad, pad)],
            dimension_numbers=("NCHW", "OIHW", "NCHW"),
            precision=jax.lax.Precision.HIGHEST)

    def bn(y, g, b):
        mean = jnp.mean(y, axis=(0, 2, 3), keepdims=True)
        var = jnp.mean((y - mean) ** 2, axis=(0, 2, 3), keepdims=True)
        return ((y - mean) * jax.lax.rsqrt(var + _BN_EPS) * g.reshape(1, -1, 1, 1)
                + b.reshape(1, -1, 1, 1))

    out = jax.nn.relu(bn(conv(x, params["w1"], stride, 1), params["g1"], params["b1"]))
    out = bn(conv(out, params["w2"], 1, 1), params["g2"], params["b2"])
    if stride != 1 or x.shape[1] != params["w1"].shape[0]:
        sc = bn(conv(x, params["ws"], stride, 0), params["gs"], params["bs"])
    else:
        sc = x
    return jax.nn.relu(out + sc)


if __name__ == "__main__":
    key = jax.random.PRNGKey(0)
    kx1, kp1, kx2, kp2 = jax.random.split(key, 4)

    # Case 1: projection shortcut (stride 2, channel change).
    in_planes, planes, stride = 4, 8, 2
    x1 = jax.random.normal(kx1, (2, in_planes, 16, 16), jnp.float32)   # NCHW
    params1 = init_basic_block(kp1, in_planes, planes, stride)
    out1 = jax.block_until_ready(basic_block_forward(x1, params1, stride=stride))
    ref1 = jax.block_until_ready(_ref_forward(x1, params1, stride))
    assert out1.shape == ref1.shape == (2, planes, 8, 8), (out1.shape, ref1.shape)
    assert jnp.allclose(out1, ref1, rtol=5e-3, atol=5e-3), \
        float(jnp.max(jnp.abs(out1 - ref1)))

    # Case 2: identity shortcut (stride 1, same channels) — exercises multi-tile grid.
    x2 = jax.random.normal(kx2, (2, 8, 16, 16), jnp.float32)
    params2 = init_basic_block(kp2, 8, 8, 1)
    out2 = jax.block_until_ready(basic_block_forward(x2, params2, stride=1))
    ref2 = jax.block_until_ready(_ref_forward(x2, params2, 1))
    assert out2.shape == ref2.shape == (2, 8, 16, 16), (out2.shape, ref2.shape)
    assert jnp.allclose(out2, ref2, rtol=5e-3, atol=5e-3), \
        float(jnp.max(jnp.abs(out2 - ref2)))

    print("KERNEL_OK")
</pallas_src>

<mosaic_0001>
module attributes {stable_mosaic.version = 11 : i64} {
  func.func @_bn_relu_kernel(%arg0: i32, %arg1: memref<128x128xf32, #tpu.memory_space<vmem>>, %arg2: memref<1x128xf32, #tpu.memory_space<vmem>>, %arg3: memref<1x128xf32, #tpu.memory_space<vmem>>, %arg4: memref<128x128xf32, #tpu.memory_space<vmem>>) attributes {dimension_semantics = [#tpu.dimension_semantics<parallel>], iteration_bounds = array<i64: 1>, scalar_prefetch = 0 : i64, scratch_operands = 0 : i64, tpu.core_type = #tpu.core_type<tc>, window_params = [{transform_indices = @transform_0, window_bounds = array<i64: 128, 128>}, {pipeline_mode = #tpu.pipeline_mode<synchronous>, transform_indices = @transform_1, window_bounds = array<i64: 1, 128>}, {pipeline_mode = #tpu.pipeline_mode<synchronous>, transform_indices = @transform_2, window_bounds = array<i64: 1, 128>}, {transform_indices = @transform_3, window_bounds = array<i64: 128, 128>}]} {
    %c0 = arith.constant 0 : index
    %c0_0 = arith.constant 0 : index
    %0 = vector.load %arg1[%c0, %c0_0] : memref<128x128xf32, #tpu.memory_space<vmem>>, vector<128x128xf32>
    %c0_1 = arith.constant 0 : index
    %c0_2 = arith.constant 0 : index
    %1 = vector.load %arg2[%c0_1, %c0_2] : memref<1x128xf32, #tpu.memory_space<vmem>>, vector<1x128xf32>
    %2 = vector.broadcast %1 : vector<1x128xf32> to vector<128x128xf32>
    %3 = arith.mulf %0, %2 : vector<128x128xf32>
    %c0_3 = arith.constant 0 : index
    %c0_4 = arith.constant 0 : index
    %4 = vector.load %arg3[%c0_3, %c0_4] : memref<1x128xf32, #tpu.memory_space<vmem>>, vector<1x128xf32>
    %5 = vector.broadcast %4 : vector<1x128xf32> to vector<128x128xf32>
    %6 = arith.addf %3, %5 : vector<128x128xf32>
    %cst = arith.constant 0.000000e+00 : f32
    %7 = vector.broadcast %cst : f32 to vector<128x128xf32>
    %8 = arith.maximumf %6, %7 : vector<128x128xf32>
    %c0_5 = arith.constant 0 : index
    %c0_6 = arith.constant 0 : index
    %9 = vector.load %arg4[%c0_5, %c0_6] : memref<128x128xf32, #tpu.memory_space<vmem>>, vector<128x128xf32>
    tpu.vector_store %arg4[%c0_5, %c0_6], %8 {strides = array<i32>} : memref<128x128xf32, #tpu.memory_space<vmem>>, vector<128x128xf32>,
    return
  }
  func.func @transform_0(%arg0: i32) -> (i32, i32) {
    %c0_i32 = arith.constant 0 : i32
    %c0_i32_0 = arith.constant 0 : i32
    return %arg0, %c0_i32 : i32, i32
  }
  func.func @transform_1(%arg0: i32) -> (i32, i32) {
    %c0_i32 = arith.constant 0 : i32
    %c0_i32_0 = arith.constant 0 : i32
    %c0_i32_1 = arith.constant 0 : i32
    return %c0_i32, %c0_i32_0 : i32, i32
  }
  func.func @transform_2(%arg0: i32) -> (i32, i32) {
    %c0_i32 = arith.constant 0 : i32
    %c0_i32_0 = arith.constant 0 : i32
    %c0_i32_1 = arith.constant 0 : i32
    return %c0_i32, %c0_i32_0 : i32, i32
  }
  func.func @transform_3(%arg0: i32) -> (i32, i32) {
    %c0_i32 = arith.constant 0 : i32
    %c0_i32_0 = arith.constant 0 : i32
    return %arg0, %c0_i32 : i32, i32
  }
}

module attributes {stable_mosaic.version = 11 : i64} {
  func.func @_matmul_stats_kernel(%arg0: i32, %arg1: memref<128x128xbf16, #tpu.memory_space<vmem>>, %arg2: memref<128x256xbf16, #tpu.memory_space<vmem>>, %arg3: memref<128x256xf32, #tpu.memory_space<vmem>>, %arg4: memref<1x256xf32, #tpu.memory_space<vmem>>, %arg5: memref<1x256xf32, #tpu.memory_space<vmem>>) attributes {dimension_semantics = [#tpu.dimension_semantics<arbitrary>], iteration_bounds = array<i64: 1>, scalar_prefetch = 0 : i64, scratch_operands = 0 : i64, tpu.core_type = #tpu.core_type<tc>, window_params = [{transform_indices = @transform_0, window_bounds = array<i64: 128, 128>}, {pipeline_mode = #tpu.pipeline_mode<synchronous>, transform_indices = @transform_1, window_bounds = array<i64: 128, 256>}, {transform_indices = @transform_2, window_bounds = array<i64: 128, 256>}, {pipeline_mode = #tpu.pipeline_mode<synchronous>, transform_indices = @transform_3, window_bounds = array<i64: 1, 256>}, {pipeline_mode = #tpu.pipeline_mode<synchronous>, transform_indices = @transform_4, window_bounds = array<i64: 1, 256>}]} {
    %c0_i32 = arith.constant 0 : i32
    %0 = arith.cmpi eq, %arg0, %c0_i32 : i32
    %1 = arith.extui %0 : i1 to i32
    %c0_i32_0 = arith.constant 0 : i32
    %2 = arith.cmpi ne, %1, %c0_i32_0 : i32
    scf.if %2 {
      %cst_16 = arith.constant 0.000000e+00 : f32
      %18 = vector.broadcast %cst_16 : f32 to vector<1x256xf32>
      %c0_17 = arith.constant 0 : index
      %c0_18 = arith.constant 0 : index
      %19 = vector.load %arg4[%c0_17, %c0_18] : memref<1x256xf32, #tpu.memory_space<vmem>>, vector<1x256xf32>
      tpu.vector_store %arg4[%c0_17, %c0_18], %18 {strides = array<i32>} : memref<1x256xf32, #tpu.memory_space<vmem>>, vector<1x256xf32>,
      %cst_19 = arith.constant 0.000000e+00 : f32
      %20 = vector.broadcast %cst_19 : f32 to vector<1x256xf32>
      %c0_20 = arith.constant 0 : index
      %c0_21 = arith.constant 0 : index
      %21 = vector.load %arg5[%c0_20, %c0_21] : memref<1x256xf32, #tpu.memory_space<vmem>>, vector<1x256xf32>
      tpu.vector_store %arg5[%c0_20, %c0_21], %20 {strides = array<i32>} : memref<1x256xf32, #tpu.memory_space<vmem>>, vector<1x256xf32>,
    } else {
    }
    %c0 = arith.constant 0 : index
    %c0_1 = arith.constant 0 : index
    %3 = vector.load %arg1[%c0, %c0_1] : memref<128x128xbf16, #tpu.memory_space<vmem>>, vector<128x128xbf16>
    %c0_2 = arith.constant 0 : index
    %c0_3 = arith.constant 0 : index
    %4 = vector.load %arg2[%c0_2, %c0_3] : memref<128x256xbf16, #tpu.memory_space<vmem>>, vector<128x256xbf16>
    %cst = arith.constant dense<0.000000e+00> : vector<128x256xf32>
    %5 = tpu.matmul %3, %4, %cst {dimension_numbers = #tpu.dot_dimension_numbers<[1], [0], [0], [1], [0, 0, 1, 1], [], []>} : vector<128x128xbf16>, vector<128x256xbf16>, vector<128x256xf32> -> vector<128x256xf32>
    %c0_4 = arith.constant 0 : index
    %c0_5 = arith.constant 0 : index
    %6 = vector.load %arg3[%c0_4, %c0_5] : memref<128x256xf32, #tpu.memory_space<vmem>>, vector<128x256xf32>
    tpu.vector_store %arg3[%c0_4, %c0_5], %5 {strides = array<i32>} : memref<128x256xf32, #tpu.memory_space<vmem>>, vector<128x256xf32>,
    %c0_6 = arith.constant 0 : index
    %c0_7 = arith.constant 0 : index
    %7 = vector.load %arg4[%c0_6, %c0_7] : memref<1x256xf32, #tpu.memory_space<vmem>>, vector<1x256xf32>
    %cst_8 = arith.constant dense<0.000000e+00> : vector<256xf32>
    %8 = vector.multi_reduction <add>, %5, %cst_8 [0] : vector<128x256xf32> to vector<256xf32>
    %9 = vector.shape_cast %8 : vector<256xf32> to vector<1x256xf32>
    %10 = arith.addf %7, %9 : vector<1x256xf32>
    %c0_9 = arith.constant 0 : index
    %c0_10 = arith.constant 0 : index
    %11 = vector.load %arg4[%c0_9, %c0_10] : memref<1x256xf32, #tpu.memory_space<vmem>>, vector<1x256xf32>
    tpu.vector_store %arg4[%c0_9, %c0_10], %10 {strides = array<i32>} : memref<1x256xf32, #tpu.memory_space<vmem>>, vector<1x256xf32>,
    %c0_11 = arith.constant 0 : index
    %c0_12 = arith.constant 0 : index
    %12 = vector.load %arg5[%c0_11, %c0_12] : memref<1x256xf32, #tpu.memory_space<vmem>>, vector<1x256xf32>
    %13 = arith.mulf %5, %5 : vector<128x256xf32>
    %cst_13 = arith.constant dense<0.000000e+00> : vector<256xf32>
    %14 = vector.multi_reduction <add>, %13, %cst_13 [0] : vector<128x256xf32> to vector<256xf32>
    %15 = vector.shape_cast %14 : vector<256xf32> to vector<1x256xf32>
    %16 = arith.addf %12, %15 : vector<1x256xf32>
    %c0_14 = arith.constant 0 : index
    %c0_15 = arith.constant 0 : index
    %17 = vector.load %arg5[%c0_14, %c0_15] : memref<1x256xf32, #tpu.memory_space<vmem>>, vector<1x256xf32>
    tpu.vector_store %arg5[%c0_14, %c0_15], %16 {strides = array<i32>} : memref<1x256xf32, #tpu.memory_space<vmem>>, vector<1x256xf32>,
    return
  }
  func.func @transform_0(%arg0: i32) -> (i32, i32) {
    %c0_i32 = arith.constant 0 : i32
    %c0_i32_0 = arith.constant 0 : i32
    return %arg0, %c0_i32 : i32, i32
  }
  func.func @transform_1(%arg0: i32) -> (i32, i32) {
    %c0_i32 = arith.constant 0 : i32
    %c0_i32_0 = arith.constant 0 : i32
    %c0_i32_1 = arith.constant 0 : i32
    return %c0_i32, %c0_i32_0 : i32, i32
  }
  func.func @transform_2(%arg0: i32) -> (i32, i32) {
    %c0_i32 = arith.constant 0 : i32
    %c0_i32_0 = arith.constant 0 : i32
    return %arg0, %c0_i32 : i32, i32
  }
  func.func @transform_3(%arg0: i32) -> (i32, i32) {
    %c0_i32 = arith.constant 0 : i32
    %c0_i32_0 = arith.constant 0 : i32
    %c0_i32_1 = arith.constant 0 : i32
    return %c0_i32, %c0_i32_0 : i32, i32
  }
  func.func @transform_4(%arg0: i32) -> (i32, i32) {
    %c0_i32 = arith.constant 0 : i32
    %c0_i32_0 = arith.constant 0 : i32
    %c0_i32_1 = arith.constant 0 : i32
    return %c0_i32, %c0_i32_0 : i32, i32
  }
}

module attributes {stable_mosaic.version = 11 : i64} {
  func.func @_bn_res_relu_kernel(%arg0: i32, %arg1: memref<128x128xf32, #tpu.memory_space<vmem>>, %arg2: memref<1x128xf32, #tpu.memory_space<vmem>>, %arg3: memref<1x128xf32, #tpu.memory_space<vmem>>, %arg4: memref<128x128xf32, #tpu.memory_space<vmem>>, %arg5: memref<1x128xf32, #tpu.memory_space<vmem>>, %arg6: memref<1x128xf32, #tpu.memory_space<vmem>>, %arg7: memref<128x128xf32, #tpu.memory_space<vmem>>) attributes {dimension_semantics = [#tpu.dimension_semantics<parallel>], iteration_bounds = array<i64: 1>, scalar_prefetch = 0 : i64, scratch_operands = 0 : i64, tpu.core_type = #tpu.core_type<tc>, window_params = [{transform_indices = @transform_0, window_bounds = array<i64: 128, 128>}, {pipeline_mode = #tpu.pipeline_mode<synchronous>, transform_indices = @transform_1, window_bounds = array<i64: 1, 128>}, {pipeline_mode = #tpu.pipeline_mode<synchronous>, transform_indices = @transform_2, window_bounds = array<i64: 1, 128>}, {transform_indices = @transform_3, window_bounds = array<i64: 128, 128>}, {pipeline_mode = #tpu.pipeline_mode<synchronous>, transform_indices = @transform_4, window_bounds = array<i64: 1, 128>}, {pipeline_mode = #tpu.pipeline_mode<synchronous>, transform_indices = @transform_5, window_bounds = array<i64: 1, 128>}, {transform_indices = @transform_6, window_bounds = array<i64: 128, 128>}]} {
    %c0 = arith.constant 0 : index
    %c0_0 = arith.constant 0 : index
    %0 = vector.load %arg1[%c0, %c0_0] : memref<128x128xf32, #tpu.memory_space<vmem>>, vector<128x128xf32>
    %c0_1 = arith.constant 0 : index
    %c0_2 = arith.constant 0 : index
    %1 = vector.load %arg2[%c0_1, %c0_2] : memref<1x128xf32, #tpu.memory_space<vmem>>, vector<1x128xf32>
    %2 = vector.broadcast %1 : vector<1x128xf32> to vector<128x128xf32>
    %3 = arith.mulf %0, %2 : vector<128x128xf32>
    %c0_3 = arith.constant 0 : index
    %c0_4 = arith.constant 0 : index
    %4 = vector.load %arg3[%c0_3, %c0_4] : memref<1x128xf32, #tpu.memory_space<vmem>>, vector<1x128xf32>
    %5 = vector.broadcast %4 : vector<1x128xf32> to vector<128x128xf32>
    %6 = arith.addf %3, %5 : vector<128x128xf32>
    %c0_5 = arith.constant 0 : index
    %c0_6 = arith.constant 0 : index
    %7 = vector.load %arg4[%c0_5, %c0_6] : memref<128x128xf32, #tpu.memory_space<vmem>>, vector<128x128xf32>
    %c0_7 = arith.constant 0 : index
    %c0_8 = arith.constant 0 : index
    %8 = vector.load %arg5[%c0_7, %c0_8] : memref<1x128xf32, #tpu.memory_space<vmem>>, vector<1x128xf32>
    %9 = vector.broadcast %8 : vector<1x128xf32> to vector<128x128xf32>
    %10 = arith.mulf %7, %9 : vector<128x128xf32>
    %11 = arith.addf %6, %10 : vector<128x128xf32>
    %c0_9 = arith.constant 0 : index
    %c0_10 = arith.constant 0 : index
    %12 = vector.load %arg6[%c0_9, %c0_10] : memref<1x128xf32, #tpu.memory_space<vmem>>, vector<1x128xf32>
    %13 = vector.broadcast %12 : vector<1x128xf32> to vector<128x128xf32>
    %14 = arith.addf %11, %13 : vector<128x128xf32>
    %cst = arith.constant 0.000000e+00 : f32
    %15 = vector.broadcast %cst : f32 to vector<128x128xf32>
    %16 = arith.maximumf %14, %15 : vector<128x128xf32>
    %c0_11 = arith.constant 0 : index
    %c0_12 = arith.constant 0 : index
    %17 = vector.load %arg7[%c0_11, %c0_12] : memref<128x128xf32, #tpu.memory_space<vmem>>, vector<128x128xf32>
    tpu.vector_store %arg7[%c0_11, %c0_12], %16 {strides = array<i32>} : memref<128x128xf32, #tpu.memory_space<vmem>>, vector<128x128xf32>,
    return
  }
  func.func @transform_0(%arg0: i32) -> (i32, i32) {
    %c0_i32 = arith.constant 0 : i32
    %c0_i32_0 = arith.constant 0 : i32
    return %arg0, %c0_i32 : i32, i32
  }
  func.func @transform_1(%arg0: i32) -> (i32, i32) {
    %c0_i32 = arith.constant 0 : i32
    %c0_i32_0 = arith.constant 0 : i32
    %c0_i32_1 = arith.constant 0 : i32
    return %c0_i32, %c0_i32_0 : i32, i32
  }
  func.func @transform_2(%arg0: i32) -> (i32, i32) {
    %c0_i32 = arith.constant 0 : i32
    %c0_i32_0 = arith.constant 0 : i32
    %c0_i32_1 = arith.constant 0 : i32
    return %c0_i32, %c0_i32_0 : i32, i32
  }
  func.func @transform_3(%arg0: i32) -> (i32, i32) {
    %c1_i32 = arith.constant 1 : i32
    %c0_i32 = arith.constant 0 : i32
    return %arg0, %c1_i32 : i32, i32
  }
  func.func @transform_4(%arg0: i32) -> (i32, i32) {
    %c0_i32 = arith.constant 0 : i32
    %c0_i32_0 = arith.constant 0 : i32
    %c0_i32_1 = arith.constant 0 : i32
    return %c0_i32, %c0_i32_0 : i32, i32
  }
  func.func @transform_5(%arg0: i32) -> (i32, i32) {
    %c0_i32 = arith.constant 0 : i32
    %c0_i32_0 = arith.constant 0 : i32
    %c0_i32_1 = arith.constant 0 : i32
    return %c0_i32, %c0_i32_0 : i32, i32
  }
  func.func @transform_6(%arg0: i32) -> (i32, i32) {
    %c0_i32 = arith.constant 0 : i32
    %c0_i32_0 = arith.constant 0 : i32
    return %arg0, %c0_i32 : i32, i32
  }
}

module attributes {stable_mosaic.version = 11 : i64} {
  func.func @_matmul_stats_kernel(%arg0: i32, %arg1: memref<128x128xbf16, #tpu.memory_space<vmem>>, %arg2: memref<128x128xbf16, #tpu.memory_space<vmem>>, %arg3: memref<128x128xf32, #tpu.memory_space<vmem>>, %arg4: memref<1x128xf32, #tpu.memory_space<vmem>>, %arg5: memref<1x128xf32, #tpu.memory_space<vmem>>) attributes {dimension_semantics = [#tpu.dimension_semantics<arbitrary>], iteration_bounds = array<i64: 1>, scalar_prefetch = 0 : i64, scratch_operands = 0 : i64, tpu.core_type = #tpu.core_type<tc>, window_params = [{transform_indices = @transform_0, window_bounds = array<i64: 128, 128>}, {pipeline_mode = #tpu.pipeline_mode<synchronous>, transform_indices = @transform_1, window_bounds = array<i64: 128, 128>}, {transform_indices = @transform_2, window_bounds = array<i64: 128, 128>}, {pipeline_mode = #tpu.pipeline_mode<synchronous>, transform_indices = @transform_3, window_bounds = array<i64: 1, 128>}, {pipeline_mode = #tpu.pipeline_mode<synchronous>, transform_indices = @transform_4, window_bounds = array<i64: 1, 128>}]} {
    %c0_i32 = arith.constant 0 : i32
    %0 = arith.cmpi eq, %arg0, %c0_i32 : i32
    %1 = arith.extui %0 : i1 to i32
    %c0_i32_0 = arith.constant 0 : i32
    %2 = arith.cmpi ne, %1, %c0_i32_0 : i32
    scf.if %2 {
      %cst_16 = arith.constant 0.000000e+00 : f32
      %18 = vector.broadcast %cst_16 : f32 to vector<1x128xf32>
      %c0_17 = arith.constant 0 : index
      %c0_18 = arith.constant 0 : index
      %19 = vector.load %arg4[%c0_17, %c0_18] : memref<1x128xf32, #tpu.memory_space<vmem>>, vector<1x128xf32>
      tpu.vector_store %arg4[%c0_17, %c0_18], %18 {strides = array<i32>} : memref<1x128xf32, #tpu.memory_space<vmem>>, vector<1x128xf32>,
      %cst_19 = arith.constant 0.000000e+00 : f32
      %20 = vector.broadcast %cst_19 : f32 to vector<1x128xf32>
      %c0_20 = arith.constant 0 : index
      %c0_21 = arith.constant 0 : index
      %21 = vector.load %arg5[%c0_20, %c0_21] : memref<1x128xf32, #tpu.memory_space<vmem>>, vector<1x128xf32>
      tpu.vector_store %arg5[%c0_20, %c0_21], %20 {strides = array<i32>} : memref<1x128xf32, #tpu.memory_space<vmem>>, vector<1x128xf32>,
    } else {
    }
    %c0 = arith.constant 0 : index
    %c0_1 = arith.constant 0 : index
    %3 = vector.load %arg1[%c0, %c0_1] : memref<128x128xbf16, #tpu.memory_space<vmem>>, vector<128x128xbf16>
    %c0_2 = arith.constant 0 : index
    %c0_3 = arith.constant 0 : index
    %4 = vector.load %arg2[%c0_2, %c0_3] : memref<128x128xbf16, #tpu.memory_space<vmem>>, vector<128x128xbf16>
    %cst = arith.constant dense<0.000000e+00> : vector<128x128xf32>
    %5 = tpu.matmul %3, %4, %cst {dimension_numbers = #tpu.dot_dimension_numbers<[1], [0], [0], [1], [0, 0, 1, 1], [], []>} : vector<128x128xbf16>, vector<128x128xbf16>, vector<128x128xf32> -> vector<128x128xf32>
    %c0_4 = arith.constant 0 : index
    %c0_5 = arith.constant 0 : index
    %6 = vector.load %arg3[%c0_4, %c0_5] : memref<128x128xf32, #tpu.memory_space<vmem>>, vector<128x128xf32>
    tpu.vector_store %arg3[%c0_4, %c0_5], %5 {strides = array<i32>} : memref<128x128xf32, #tpu.memory_space<vmem>>, vector<128x128xf32>,
    %c0_6 = arith.constant 0 : index
    %c0_7 = arith.constant 0 : index
    %7 = vector.load %arg4[%c0_6, %c0_7] : memref<1x128xf32, #tpu.memory_space<vmem>>, vector<1x128xf32>
    %cst_8 = arith.constant dense<0.000000e+00> : vector<128xf32>
    %8 = vector.multi_reduction <add>, %5, %cst_8 [0] : vector<128x128xf32> to vector<128xf32>
    %9 = vector.shape_cast %8 : vector<128xf32> to vector<1x128xf32>
    %10 = arith.addf %7, %9 : vector<1x128xf32>
    %c0_9 = arith.constant 0 : index
    %c0_10 = arith.constant 0 : index
    %11 = vector.load %arg4[%c0_9, %c0_10] : memref<1x128xf32, #tpu.memory_space<vmem>>, vector<1x128xf32>
    tpu.vector_store %arg4[%c0_9, %c0_10], %10 {strides = array<i32>} : memref<1x128xf32, #tpu.memory_space<vmem>>, vector<1x128xf32>,
    %c0_11 = arith.constant 0 : index
    %c0_12 = arith.constant 0 : index
    %12 = vector.load %arg5[%c0_11, %c0_12] : memref<1x128xf32, #tpu.memory_space<vmem>>, vector<1x128xf32>
    %13 = arith.mulf %5, %5 : vector<128x128xf32>
    %cst_13 = arith.constant dense<0.000000e+00> : vector<128xf32>
    %14 = vector.multi_reduction <add>, %13, %cst_13 [0] : vector<128x128xf32> to vector<128xf32>
    %15 = vector.shape_cast %14 : vector<128xf32> to vector<1x128xf32>
    %16 = arith.addf %12, %15 : vector<1x128xf32>
    %c0_14 = arith.constant 0 : index
    %c0_15 = arith.constant 0 : index
    %17 = vector.load %arg5[%c0_14, %c0_15] : memref<1x128xf32, #tpu.memory_space<vmem>>, vector<1x128xf32>
    tpu.vector_store %arg5[%c0_14, %c0_15], %16 {strides = array<i32>} : memref<1x128xf32, #tpu.memory_space<vmem>>, vector<1x128xf32>,
    return
  }
  func.func @transform_0(%arg0: i32) -> (i32, i32) {
    %c0_i32 = arith.constant 0 : i32
    %c0_i32_0 = arith.constant 0 : i32
    return %arg0, %c0_i32 : i32, i32
  }
  func.func @transform_1(%arg0: i32) -> (i32, i32) {
    %c0_i32 = arith.constant 0 : i32
    %c0_i32_0 = arith.constant 0 : i32
    %c0_i32_1 = arith.constant 0 : i32
    return %c0_i32, %c0_i32_0 : i32, i32
  }
  func.func @transform_2(%arg0: i32) -> (i32, i32) {
    %c0_i32 = arith.constant 0 : i32
    %c0_i32_0 = arith.constant 0 : i32
    return %arg0, %c0_i32 : i32, i32
  }
  func.func @transform_3(%arg0: i32) -> (i32, i32) {
    %c0_i32 = arith.constant 0 : i32
    %c0_i32_0 = arith.constant 0 : i32
    %c0_i32_1 = arith.constant 0 : i32
    return %c0_i32, %c0_i32_0 : i32, i32
  }
  func.func @transform_4(%arg0: i32) -> (i32, i32) {
    %c0_i32 = arith.constant 0 : i32
    %c0_i32_0 = arith.constant 0 : i32
    %c0_i32_1 = arith.constant 0 : i32
    return %c0_i32, %c0_i32_0 : i32, i32
  }
}

</mosaic_0001>

<llo_original>
// kernel: basic_block_forward.5
$region0: #{basic_block_forward.5}
  #allocation0 [shape = 'u32[]', space=smem, size = 0x4, offset = 0x4, fixed_abs, tag = 'smem constant byte address 0x4 - core index']
  #allocation1 [shape = 'u32[144,128]{1,0:T(1,128)}', space=vmem, size = 0x12000, scoped, tag = 'internal scratch']
  %s0 = inlined_call_operand.vmem [shape: f32[128,256], index: 0, kind: input, shape index: {}]
  %s1 = inlined_call_operand.vmem [shape: f32[1,128], index: 1, kind: input, shape index: {}]
  %s2 = inlined_call_operand.vmem [shape: f32[1,128], index: 2, kind: input, shape index: {}]
  %s3 = inlined_call_operand.vmem [shape: f32[128,128], index: 3, kind: output, shape index: {}]
  %s4 = sld [smem:[#allocation0]]
  $region60: #{basic_block_forward.5} parent=0
    _
  %s6 = ssub.s32 1, %s4
  %s7 = scalar_select 0, %s6, %s4
  $region1: #{basic_block_forward.5} parent=0
    #allocation2 [shape = 'u8[65536]{0}', space=vmem, size = 0x10000, scoped, tag = 'input window, operand 0, single buffered']
    // Predicated region
    $region2: #{basic_block_forward.5} parent=1 // pred_check
      _
    $region3: #{basic_block_forward.5} parent=1 // pred_check_branch
      %9 = sbr.rel (0) target = $region5
    $region4: #{basic_block_forward.5} parent=1 // pred_region
      // Predicated region
      $region6: #{basic_block_forward.5} parent=4 // pred_check
        _
      $region7: #{basic_block_forward.5} parent=4 // pred_check_branch
        %11 = sbr.rel (0) target = $region9
      $region8: #{basic_block_forward.5} parent=4 // pred_region
        // Predicated region
        $region10: #{basic_block_forward.5} parent=8 // pred_check
          _
        $region11: #{basic_block_forward.5} parent=8 // pred_check_branch
          %13 = sbr.rel (0) target = $region13
        $region12: #{basic_block_forward.5} parent=8 // pred_region
          // Predicated region
          $region25: #{basic_block_forward.5} parent=12 // pred_check
            _
          $region26: #{basic_block_forward.5} parent=12 // pred_check_branch
            %59 = sbr.rel (0) target = $region28
          $region27: #{basic_block_forward.5} parent=12 // pred_region
            loop: start=0, step=1, limit=1
            $region29: #{basic_block_forward.5} parent=27 // loop_pre_header
              _
            $region30: #{basic_block_forward.5} parent=27 // loop_header
              %s61 = sphi 0, %s65
              %p62 = scmp.ge.s32.totalorder %s61, 1
              %s66 = sphi %s0, %s0
              %s67 = sphi [#allocation2], [#allocation2]
            $region31: #{basic_block_forward.5} parent=27 // loop_header_branch
              %64 = sbr.rel (%p62) target = $region35
            $region32: #{basic_block_forward.5} parent=27 // loop_body
              %v68 = vld [vmem:[%s66] sm:$0xff]
              %69 = vst [vmem:[%s67] sm:$0xff] %v68
              %v70 = vld [vmem:[%s66 + $0x10] sm:$0xff]
              %71 = vst [vmem:[%s67 + $0x8] sm:$0xff] %v70
              %v72 = vld [vmem:[%s66 + $0x20] sm:$0xff]
              %73 = vst [vmem:[%s67 + $0x10] sm:$0xff] %v72
              %v74 = vld [vmem:[%s66 + $0x30] sm:$0xff]
              %75 = vst [vmem:[%s67 + $0x18] sm:$0xff] %v74
              %v76 = vld [vmem:[%s66 + $0x40] sm:$0xff]
              %77 = vst [vmem:[%s67 + $0x20] sm:$0xff] %v76
              %v78 = vld [vmem:[%s66 + $0x50] sm:$0xff]
              %79 = vst [vmem:[%s67 + $0x28] sm:$0xff] %v78
              %v80 = vld [vmem:[%s66 + $0x60] sm:$0xff]
              %81 = vst [vmem:[%s67 + $0x30] sm:$0xff] %v80
              %v82 = vld [vmem:[%s66 + $0x70] sm:$0xff]
              %83 = vst [vmem:[%s67 + $0x38] sm:$0xff] %v82
              %v84 = vld [vmem:[%s66 + $0x80] sm:$0xff]
              %85 = vst [vmem:[%s67 + $0x40] sm:$0xff] %v84
              %v86 = vld [vmem:[%s66 + $0x90] sm:$0xff]
              %87 = vst [vmem:[%s67 + $0x48] sm:$0xff] %v86
              %v88 = vld [vmem:[%s66 + $0xa0] sm:$0xff]
              %89 = vst [vmem:[%s67 + $0x50] sm:$0xff] %v88
              %v90 = vld [vmem:[%s66 + $0xb0] sm:$0xff]
              %91 = vst [vmem:[%s67 + $0x58] sm:$0xff] %v90
              %v92 = vld [vmem:[%s66 + $0xc0] sm:$0xff]
              %93 = vst [vmem:[%s67 + $0x60] sm:$0xff] %v92
              %v94 = vld [vmem:[%s66 + $0xd0] sm:$0xff]
              %95 = vst [vmem:[%s67 + $0x68] sm:$0xff] %v94
              %v96 = vld [vmem:[%s66 + $0xe0] sm:$0xff]
              %97 = vst [vmem:[%s67 + $0x70] sm:$0xff] %v96
              %v98 = vld [vmem:[%s66 + $0xf0] sm:$0xff]
              %99 = vst [vmem:[%s67 + $0x78] sm:$0xff] %v98
            $region33: #{basic_block_forward.5} parent=27 // loop_footer
              %s65 = sadd.s32 1, %s61
            $region34: #{basic_block_forward.5} parent=27 // loop_footer_branch
              %60 = sbr.rel target = $region30
            $region35: #{basic_block_forward.5} parent=27 // loop_exit
              _
          $region28: #{basic_block_forward.5} parent=12 // pred_fallthru
            _
          // Predicated region
          $region36: #{basic_block_forward.5} parent=12 // pred_check
            _
          $region37: #{basic_block_forward.5} parent=12 // pred_check_branch
            %101 = sbr.rel target = $region39
          $region38: #{basic_block_forward.5} parent=12 // pred_region
            _
          $region39: #{basic_block_forward.5} parent=12 // pred_fallthru
            _
        $region13: #{basic_block_forward.5} parent=8 // pred_fallthru
          _
        // Predicated region
        $region14: #{basic_block_forward.5} parent=8 // pred_check
          _
        $region15: #{basic_block_forward.5} parent=8 // pred_check_branch
          %15 = sbr.rel target = $region17
        $region16: #{basic_block_forward.5} parent=8 // pred_region
          %s17 = ssub.s32 256, 1
          loop: start=0, step=1, limit=1
          $region18: #{basic_block_forward.5} parent=16 // loop_pre_header
            _
          $region19: #{basic_block_forward.5} parent=16 // loop_header
            %s19 = sphi 0, %s23
            %p20 = scmp.ge.s32.totalorder %s19, 1
            %s24 = sphi %s0, %s0
            %s25 = sphi [#allocation2], [#allocation2]
          $region20: #{basic_block_forward.5} parent=16 // loop_header_branch
            %22 = sbr.rel (%p20) target = $region24
          $region21: #{basic_block_forward.5} parent=16 // loop_body
            %v26 = vld [vmem:[%s24] sm:%s17]
            %27 = vst [vmem:[%s25] sm:%s17] %v26
            %v28 = vld [vmem:[%s24 + $0x10] sm:%s17]
            %29 = vst [vmem:[%s25 + $0x8] sm:%s17] %v28
            %v30 = vld [vmem:[%s24 + $0x20] sm:%s17]
            %31 = vst [vmem:[%s25 + $0x10] sm:%s17] %v30
            %v32 = vld [vmem:[%s24 + $0x30] sm:%s17]
            %33 = vst [vmem:[%s25 + $0x18] sm:%s17] %v32
            %v34 = vld [vmem:[%s24 + $0x40] sm:%s17]
            %35 = vst [vmem:[%s25 + $0x20] sm:%s17] %v34
            %v36 = vld [vmem:[%s24 + $0x50] sm:%s17]
            %37 = vst [vmem:[%s25 + $0x28] sm:%s17] %v36
            %v38 = vld [vmem:[%s24 + $0x60] sm:%s17]
            %39 = vst [vmem:[%s25 + $0x30] sm:%s17] %v38
            %v40 = vld [vmem:[%s24 + $0x70] sm:%s17]
            %41 = vst [vmem:[%s25 + $0x38] sm:%s17] %v40
            %v42 = vld [vmem:[%s24 + $0x80] sm:%s17]
            %43 = vst [vmem:[%s25 + $0x40] sm:%s17] %v42
            %v44 = vld [vmem:[%s24 + $0x90] sm:%s17]
            %45 = vst [vmem:[%s25 + $0x48] sm:%s17] %v44
            %v46 = vld [vmem:[%s24 + $0xa0] sm:%s17]
            %47 = vst [vmem:[%s25 + $0x50] sm:%s17] %v46
            %v48 = vld [vmem:[%s24 + $0xb0] sm:%s17]
            %49 = vst [vmem:[%s25 + $0x58] sm:%s17] %v48
            %v50 = vld [vmem:[%s24 + $0xc0] sm:%s17]
            %51 = vst [vmem:[%s25 + $0x60] sm:%s17] %v50
            %v52 = vld [vmem:[%s24 + $0xd0] sm:%s17]
            %53 = vst [vmem:[%s25 + $0x68] sm:%s17] %v52
            %v54 = vld [vmem:[%s24 + $0xe0] sm:%s17]
            %55 = vst [vmem:[%s25 + $0x70] sm:%s17] %v54
            %v56 = vld [vmem:[%s24 + $0xf0] sm:%s17]
            %57 = vst [vmem:[%s25 + $0x78] sm:%s17] %v56
          $region22: #{basic_block_forward.5} parent=16 // loop_footer
            %s23 = sadd.s32 1, %s19
          $region23: #{basic_block_forward.5} parent=16 // loop_footer_branch
            %18 = sbr.rel target = $region19
          $region24: #{basic_block_forward.5} parent=16 // loop_exit
            _
        $region17: #{basic_block_forward.5} parent=8 // pred_fallthru
          _
      $region9: #{basic_block_forward.5} parent=4 // pred_fallthru
        _
      %102 = vnop
    $region5: #{basic_block_forward.5} parent=1 // pred_fallthru
      _
    // Predicated region
    $region40: #{basic_block_forward.5} parent=1 // pred_check
      _
    $region41: #{basic_block_forward.5} parent=1 // pred_check_branch
      %104 = sbr.rel (0) target = $region43
    $region42: #{basic_block_forward.5} parent=1 // pred_region
      _
    $region43: #{basic_block_forward.5} parent=1 // pred_fallthru
      _
    // Predicated region
    $region44: #{basic_block_forward.5} parent=1 // pred_check
      _
    $region45: #{basic_block_forward.5} parent=1 // pred_check_branch
      %106 = sbr.rel (0) target = $region47
    $region46: #{basic_block_forward.5} parent=1 // pred_region
      _
    $region47: #{basic_block_forward.5} parent=1 // pred_fallthru
      _
    // Predicated region
    $region48: #{basic_block_forward.5} parent=1 // pred_check
      _
    $region49: #{basic_block_forward.5} parent=1 // pred_check_branch
      %108 = sbr.rel (0) target = $region51
    $region50: #{basic_block_forward.5} parent=1 // pred_region
      _
    $region51: #{basic_block_forward.5} parent=1 // pred_fallthru
      _
    %v109 = vld [vmem:[#allocation2] sm:$0xff]
    %v110 = vld [vmem:[#allocation2 + $0x8] sm:$0xff]
    %v111 = vld [vmem:[#allocation2 + $0x10] sm:$0xff]
    %v112 = vld [vmem:[#allocation2 + $0x18] sm:$0xff]
    %v113 = vld [vmem:[#allocation2 + $0x20] sm:$0xff]
    %v114 = vld [vmem:[#allocation2 + $0x28] sm:$0xff]
    %v115 = vld [vmem:[#allocation2 + $0x30] sm:$0xff]
    %v116 = vld [vmem:[#allocation2 + $0x38] sm:$0xff]
    %v117 = vld [vmem:[#allocation2 + $0x40] sm:$0xff]
    %v118 = vld [vmem:[#allocation2 + $0x48] sm:$0xff]
    %v119 = vld [vmem:[#allocation2 + $0x50] sm:$0xff]
    %v120 = vld [vmem:[#allocation2 + $0x58] sm:$0xff]
    %v121 = vld [vmem:[#allocation2 + $0x60] sm:$0xff]
    %v122 = vld [vmem:[#allocation2 + $0x68] sm:$0xff]
    %v123 = vld [vmem:[#allocation2 + $0x70] sm:$0xff]
    %v124 = vld [vmem:[#allocation2 + $0x78] sm:$0xff]
    %v125 = vld [vmem:[%s1] sm:$0x1]
    %v127 = vlaneseq
    %v128 = vshrl.u32 %v127, 7
    %v129 = vsub.s32 0, %v128
    %v130 = vrot.slane %v125, %v129
    %v132 = vmul.f32 %v109, %v130
    %v133 = vmul.f32 %v110, %v130
    %v134 = vmul.f32 %v111, %v130
    %v135 = vmul.f32 %v112, %v130
    %v136 = vmul.f32 %v113, %v130
    %v137 = vmul.f32 %v114, %v130
    %v138 = vmul.f32 %v115, %v130
    %v139 = vmul.f32 %v116, %v130
    %v140 = vmul.f32 %v117, %v130
    %v141 = vmul.f32 %v118, %v130
    %v142 = vmul.f32 %v119, %v130
    %v143 = vmul.f32 %v120, %v130
    %v144 = vmul.f32 %v121, %v130
    %v145 = vmul.f32 %v122, %v130
    %v146 = vmul.f32 %v123, %v130
    %v147 = vmul.f32 %v124, %v130
    %v148 = vld [vmem:[%s2] sm:$0x1]
    %v150 = vlaneseq
    %v151 = vshrl.u32 %v150, 7
    %v152 = vsub.s32 0, %v151
    %v153 = vrot.slane %v148, %v152
    %v155 = vadd.f32 %v132, %v153
    %v156 = vadd.f32 %v133, %v153
    %v157 = vadd.f32 %v134, %v153
    %v158 = vadd.f32 %v135, %v153
    %v159 = vadd.f32 %v136, %v153
    %v160 = vadd.f32 %v137, %v153
    %v161 = vadd.f32 %v138, %v153
    %v162 = vadd.f32 %v139, %v153
    %v163 = vadd.f32 %v140, %v153
    %v164 = vadd.f32 %v141, %v153
    %v165 = vadd.f32 %v142, %v153
    %v166 = vadd.f32 %v143, %v153
    %v167 = vadd.f32 %v144, %v153
    %v168 = vadd.f32 %v145, %v153
    %v169 = vadd.f32 %v146, %v153
    %v170 = vadd.f32 %v147, %v153
    %v171 = vmax.f32 %v155, 0.0
    %v172 = vmax.f32 %v156, 0.0
    %v173 = vmax.f32 %v157, 0.0
    %v174 = vmax.f32 %v158, 0.0
    %v175 = vmax.f32 %v159, 0.0
    %v176 = vmax.f32 %v160, 0.0
    %v177 = vmax.f32 %v161, 0.0
    %v178 = vmax.f32 %v162, 0.0
    %v179 = vmax.f32 %v163, 0.0
    %v180 = vmax.f32 %v164, 0.0
    %v181 = vmax.f32 %v165, 0.0
    %v182 = vmax.f32 %v166, 0.0
    %v183 = vmax.f32 %v167, 0.0
    %v184 = vmax.f32 %v168, 0.0
    %v185 = vmax.f32 %v169, 0.0
    %v186 = vmax.f32 %v170, 0.0
    %187 = vst [vmem:[%s3] sm:$0xff] %v171
    %188 = vst [vmem:[%s3 + $0x8] sm:$0xff] %v172
    %189 = vst [vmem:[%s3 + $0x10] sm:$0xff] %v173
    %190 = vst [vmem:[%s3 + $0x18] sm:$0xff] %v174
    %191 = vst [vmem:[%s3 + $0x20] sm:$0xff] %v175
    %192 = vst [vmem:[%s3 + $0x28] sm:$0xff] %v176
    %193 = vst [vmem:[%s3 + $0x30] sm:$0xff] %v177
    %194 = vst [vmem:[%s3 + $0x38] sm:$0xff] %v178
    %195 = vst [vmem:[%s3 + $0x40] sm:$0xff] %v179
    %196 = vst [vmem:[%s3 + $0x48] sm:$0xff] %v180
    %197 = vst [vmem:[%s3 + $0x50] sm:$0xff] %v181
    %198 = vst [vmem:[%s3 + $0x58] sm:$0xff] %v182
    %199 = vst [vmem:[%s3 + $0x60] sm:$0xff] %v183
    %200 = vst [vmem:[%s3 + $0x68] sm:$0xff] %v184
    %201 = vst [vmem:[%s3 + $0x70] sm:$0xff] %v185
    %202 = vst [vmem:[%s3 + $0x78] sm:$0xff] %v186
    // Predicated region
    $region52: #{basic_block_forward.5} parent=1 // pred_check
      _
    $region53: #{basic_block_forward.5} parent=1 // pred_check_branch
      %204 = sbr.rel (0) target = $region55
    $region54: #{basic_block_forward.5} parent=1 // pred_region
      _
    $region55: #{basic_block_forward.5} parent=1 // pred_fallthru
      _
    // Predicated region
    $region56: #{basic_block_forward.5} parent=1 // pred_check
      _
    $region57: #{basic_block_forward.5} parent=1 // pred_check_branch
      %206 = sbr.rel (0) target = $region59
    $region58: #{basic_block_forward.5} parent=1 // pred_region
      _
    $region59: #{basic_block_forward.5} parent=1 // pred_fallthru
      _

// kernel: basic_block_forward.7
$region0: #{basic_block_forward.7}
  #allocation0 [shape = 'u32[]', space=smem, size = 0x4, offset = 0x4, fixed_abs, tag = 'smem constant byte address 0x4 - core index']
  #allocation1 [shape = 'u32[144,128]{1,0:T(1,128)}', space=vmem, size = 0x12000, scoped, tag = 'internal scratch']
  %s0 = inlined_call_operand.vmem [shape: f32[128,128], index: 0, kind: input, shape index: {}]
  %s1 = inlined_call_operand.vmem [shape: f32[1,128], index: 1, kind: input, shape index: {}]
  %s2 = inlined_call_operand.vmem [shape: f32[1,128], index: 2, kind: input, shape index: {}]
  %s3 = inlined_call_operand.vmem [shape: f32[128,256], index: 3, kind: input, shape index: {}]
  %s4 = inlined_call_operand.vmem [shape: f32[1,128], index: 4, kind: input, shape index: {}]
  %s5 = inlined_call_operand.vmem [shape: f32[1,128], index: 5, kind: input, shape index: {}]
  %s6 = inlined_call_operand.vmem [shape: f32[128,128], index: 6, kind: output, shape index: {}]
  %s7 = sld [smem:[#allocation0]]
  $region72: #{basic_block_forward.7} parent=0
    _
  %s9 = ssub.s32 1, %s7
  %s10 = scalar_select 0, %s9, %s7
  $region1: #{basic_block_forward.7} parent=0
    #allocation2 [shape = 'u8[65536]{0}', space=vmem, size = 0x10000, scoped, tag = 'input window, operand 3, single buffered']
    // Predicated region
    $region2: #{basic_block_forward.7} parent=1 // pred_check
      _
    $region3: #{basic_block_forward.7} parent=1 // pred_check_branch
      %12 = sbr.rel (0) target = $region5
    $region4: #{basic_block_forward.7} parent=1 // pred_region
      _
    $region5: #{basic_block_forward.7} parent=1 // pred_fallthru
      _
    // Predicated region
    $region6: #{basic_block_forward.7} parent=1 // pred_check
      _
    $region7: #{basic_block_forward.7} parent=1 // pred_check_branch
      %14 = sbr.rel (0) target = $region9
    $region8: #{basic_block_forward.7} parent=1 // pred_region
      _
    $region9: #{basic_block_forward.7} parent=1 // pred_fallthru
      _
    // Predicated region
    $region10: #{basic_block_forward.7} parent=1 // pred_check
      _
    $region11: #{basic_block_forward.7} parent=1 // pred_check_branch
      %16 = sbr.rel (0) target = $region13
    $region12: #{basic_block_forward.7} parent=1 // pred_region
      _
    $region13: #{basic_block_forward.7} parent=1 // pred_fallthru
      _
    // Predicated region
    $region14: #{basic_block_forward.7} parent=1 // pred_check
      _
    $region15: #{basic_block_forward.7} parent=1 // pred_check_branch
      %18 = sbr.rel (0) target = $region17
    $region16: #{basic_block_forward.7} parent=1 // pred_region
      %s19 = scalar_lea.vmem %s3, 8
      // Predicated region
      $region18: #{basic_block_forward.7} parent=16 // pred_check
        _
      $region19: #{basic_block_forward.7} parent=16 // pred_check_branch
        %21 = sbr.rel (0) target = $region21
      $region20: #{basic_block_forward.7} parent=16 // pred_region
        // Predicated region
        $region22: #{basic_block_forward.7} parent=20 // pred_check
          _
        $region23: #{basic_block_forward.7} parent=20 // pred_check_branch
          %23 = sbr.rel (0) target = $region25
        $region24: #{basic_block_forward.7} parent=20 // pred_region
          // Predicated region
          $region37: #{basic_block_forward.7} parent=24 // pred_check
            _
          $region38: #{basic_block_forward.7} parent=24 // pred_check_branch
            %69 = sbr.rel (0) target = $region40
          $region39: #{basic_block_forward.7} parent=24 // pred_region
            loop: start=0, step=1, limit=1
            $region41: #{basic_block_forward.7} parent=39 // loop_pre_header
              _
            $region42: #{basic_block_forward.7} parent=39 // loop_header
              %s71 = sphi 0, %s75
              %p72 = scmp.ge.s32.totalorder %s71, 1
              %s76 = sphi %s19, %s19
              %s77 = sphi [#allocation2], [#allocation2]
            $region43: #{basic_block_forward.7} parent=39 // loop_header_branch
              %74 = sbr.rel (%p72) target = $region47
            $region44: #{basic_block_forward.7} parent=39 // loop_body
              %v78 = vld [vmem:[%s76] sm:$0xff]
              %79 = vst [vmem:[%s77] sm:$0xff] %v78
              %v80 = vld [vmem:[%s76 + $0x10] sm:$0xff]
              %81 = vst [vmem:[%s77 + $0x8] sm:$0xff] %v80
              %v82 = vld [vmem:[%s76 + $0x20] sm:$0xff]
              %83 = vst [vmem:[%s77 + $0x10] sm:$0xff] %v82
              %v84 = vld [vmem:[%s76 + $0x30] sm:$0xff]
              %85 = vst [vmem:[%s77 + $0x18] sm:$0xff] %v84
              %v86 = vld [vmem:[%s76 + $0x40] sm:$0xff]
              %87 = vst [vmem:[%s77 + $0x20] sm:$0xff] %v86
              %v88 = vld [vmem:[%s76 + $0x50] sm:$0xff]
              %89 = vst [vmem:[%s77 + $0x28] sm:$0xff] %v88
              %v90 = vld [vmem:[%s76 + $0x60] sm:$0xff]
              %91 = vst [vmem:[%s77 + $0x30] sm:$0xff] %v90
              %v92 = vld [vmem:[%s76 + $0x70] sm:$0xff]
              %93 = vst [vmem:[%s77 + $0x38] sm:$0xff] %v92
              %v94 = vld [vmem:[%s76 + $0x80] sm:$0xff]
              %95 = vst [vmem:[%s77 + $0x40] sm:$0xff] %v94
              %v96 = vld [vmem:[%s76 + $0x90] sm:$0xff]
              %97 = vst [vmem:[%s77 + $0x48] sm:$0xff] %v96
              %v98 = vld [vmem:[%s76 + $0xa0] sm:$0xff]
              %99 = vst [vmem:[%s77 + $0x50] sm:$0xff] %v98
              %v100 = vld [vmem:[%s76 + $0xb0] sm:$0xff]
              %101 = vst [vmem:[%s77 + $0x58] sm:$0xff] %v100
              %v102 = vld [vmem:[%s76 + $0xc0] sm:$0xff]
              %103 = vst [vmem:[%s77 + $0x60] sm:$0xff] %v102
              %v104 = vld [vmem:[%s76 + $0xd0] sm:$0xff]
              %105 = vst [vmem:[%s77 + $0x68] sm:$0xff] %v104
              %v106 = vld [vmem:[%s76 + $0xe0] sm:$0xff]
              %107 = vst [vmem:[%s77 + $0x70] sm:$0xff] %v106
              %v108 = vld [vmem:[%s76 + $0xf0] sm:$0xff]
              %109 = vst [vmem:[%s77 + $0x78] sm:$0xff] %v108
            $region45: #{basic_block_forward.7} parent=39 // loop_footer
              %s75 = sadd.s32 1, %s71
            $region46: #{basic_block_forward.7} parent=39 // loop_footer_branch
              %70 = sbr.rel target = $region42
            $region47: #{basic_block_forward.7} parent=39 // loop_exit
              _
          $region40: #{basic_block_forward.7} parent=24 // pred_fallthru
            _
          // Predicated region
          $region48: #{basic_block_forward.7} parent=24 // pred_check
            _
          $region49: #{basic_block_forward.7} parent=24 // pred_check_branch
            %111 = sbr.rel target = $region51
          $region50: #{basic_block_forward.7} parent=24 // pred_region
            _
          $region51: #{basic_block_forward.7} parent=24 // pred_fallthru
            _
        $region25: #{basic_block_forward.7} parent=20 // pred_fallthru
          _
        // Predicated region
        $region26: #{basic_block_forward.7} parent=20 // pred_check
          _
        $region27: #{basic_block_forward.7} parent=20 // pred_check_branch
          %25 = sbr.rel target = $region29
        $region28: #{basic_block_forward.7} parent=20 // pred_region
          %s27 = ssub.s32 256, 1
          loop: start=0, step=1, limit=1
          $region30: #{basic_block_forward.7} parent=28 // loop_pre_header
            _
          $region31: #{basic_block_forward.7} parent=28 // loop_header
            %s29 = sphi 0, %s33
            %p30 = scmp.ge.s32.totalorder %s29, 1
            %s34 = sphi %s19, %s19
            %s35 = sphi [#allocation2], [#allocation2]
          $region32: #{basic_block_forward.7} parent=28 // loop_header_branch
            %32 = sbr.rel (%p30) target = $region36
          $region33: #{basic_block_forward.7} parent=28 // loop_body
            %v36 = vld [vmem:[%s34] sm:%s27]
            %37 = vst [vmem:[%s35] sm:%s27] %v36
            %v38 = vld [vmem:[%s34 + $0x10] sm:%s27]
            %39 = vst [vmem:[%s35 + $0x8] sm:%s27] %v38
            %v40 = vld [vmem:[%s34 + $0x20] sm:%s27]
            %41 = vst [vmem:[%s35 + $0x10] sm:%s27] %v40
            %v42 = vld [vmem:[%s34 + $0x30] sm:%s27]
            %43 = vst [vmem:[%s35 + $0x18] sm:%s27] %v42
            %v44 = vld [vmem:[%s34 + $0x40] sm:%s27]
            %45 = vst [vmem:[%s35 + $0x20] sm:%s27] %v44
            %v46 = vld [vmem:[%s34 + $0x50] sm:%s27]
            %47 = vst [vmem:[%s35 + $0x28] sm:%s27] %v46
            %v48 = vld [vmem:[%s34 + $0x60] sm:%s27]
            %49 = vst [vmem:[%s35 + $0x30] sm:%s27] %v48
            %v50 = vld [vmem:[%s34 + $0x70] sm:%s27]
            %51 = vst [vmem:[%s35 + $0x38] sm:%s27] %v50
            %v52 = vld [vmem:[%s34 + $0x80] sm:%s27]
            %53 = vst [vmem:[%s35 + $0x40] sm:%s27] %v52
            %v54 = vld [vmem:[%s34 + $0x90] sm:%s27]
            %55 = vst [vmem:[%s35 + $0x48] sm:%s27] %v54
            %v56 = vld [vmem:[%s34 + $0xa0] sm:%s27]
            %57 = vst [vmem:[%s35 + $0x50] sm:%s27] %v56
            %v58 = vld [vmem:[%s34 + $0xb0] sm:%s27]
            %59 = vst [vmem:[%s35 + $0x58] sm:%s27] %v58
            %v60 = vld [vmem:[%s34 + $0xc0] sm:%s27]
            %61 = vst [vmem:[%s35 + $0x60] sm:%s27] %v60
            %v62 = vld [vmem:[%s34 + $0xd0] sm:%s27]
            %63 = vst [vmem:[%s35 + $0x68] sm:%s27] %v62
            %v64 = vld [vmem:[%s34 + $0xe0] sm:%s27]
            %65 = vst [vmem:[%s35 + $0x70] sm:%s27] %v64
            %v66 = vld [vmem:[%s34 + $0xf0] sm:%s27]
            %67 = vst [vmem:[%s35 + $0x78] sm:%s27] %v66
          $region34: #{basic_block_forward.7} parent=28 // loop_footer
            %s33 = sadd.s32 1, %s29
          $region35: #{basic_block_forward.7} parent=28 // loop_footer_branch
            %28 = sbr.rel target = $region31
          $region36: #{basic_block_forward.7} parent=28 // loop_exit
            _
        $region29: #{basic_block_forward.7} parent=20 // pred_fallthru
          _
      $region21: #{basic_block_forward.7} parent=16 // pred_fallthru
        _
      %112 = vnop
    $region17: #{basic_block_forward.7} parent=1 // pred_fallthru
      _
    // Predicated region
    $region52: #{basic_block_forward.7} parent=1 // pred_check
      _
    $region53: #{basic_block_forward.7} parent=1 // pred_check_branch
      %114 = sbr.rel (0) target = $region55
    $region54: #{basic_block_forward.7} parent=1 // pred_region
      _
    $region55: #{basic_block_forward.7} parent=1 // pred_fallthru
      _
    // Predicated region
    $region56: #{basic_block_forward.7} parent=1 // pred_check
      _
    $region57: #{basic_block_forward.7} parent=1 // pred_check_branch
      %116 = sbr.rel (0) target = $region59
    $region58: #{basic_block_forward.7} parent=1 // pred_region
      _
    $region59: #{basic_block_forward.7} parent=1 // pred_fallthru
      _
    // Predicated region
    $region60: #{basic_block_forward.7} parent=1 // pred_check
      _
    $region61: #{basic_block_forward.7} parent=1 // pred_check_branch
      %118 = sbr.rel (0) target = $region63
    $region62: #{basic_block_forward.7} parent=1 // pred_region
      _
    $region63: #{basic_block_forward.7} parent=1 // pred_fallthru
      _
    %v119 = vld [vmem:[%s0] sm:$0xff]
    %v120 = vld [vmem:[%s0 + $0x8] sm:$0xff]
    %v121 = vld [vmem:[%s0 + $0x10] sm:$0xff]
    %v122 = vld [vmem:[%s0 + $0x18] sm:$0xff]
    %v123 = vld [vmem:[%s0 + $0x20] sm:$0xff]
    %v124 = vld [vmem:[%s0 + $0x28] sm:$0xff]
    %v125 = vld [vmem:[%s0 + $0x30] sm:$0xff]
    %v126 = vld [vmem:[%s0 + $0x38] sm:$0xff]
    %v127 = vld [vmem:[%s0 + $0x40] sm:$0xff]
    %v128 = vld [vmem:[%s0 + $0x48] sm:$0xff]
    %v129 = vld [vmem:[%s0 + $0x50] sm:$0xff]
    %v130 = vld [vmem:[%s0 + $0x58] sm:$0xff]
    %v131 = vld [vmem:[%s0 + $0x60] sm:$0xff]
    %v132 = vld [vmem:[%s0 + $0x68] sm:$0xff]
    %v133 = vld [vmem:[%s0 + $0x70] sm:$0xff]
    %v134 = vld [vmem:[%s0 + $0x78] sm:$0xff]
    %v135 = vld [vmem:[%s1] sm:$0x1]
    %v137 = vlaneseq
    %v138 = vshrl.u32 %v137, 7
    %v139 = vsub.s32 0, %v138
    %v140 = vrot.slane %v135, %v139
    %v142 = vmul.f32 %v119, %v140
    %v143 = vmul.f32 %v120, %v140
    %v144 = vmul.f32 %v121, %v140
    %v145 = vmul.f32 %v122, %v140
    %v146 = vmul.f32 %v123, %v140
    %v147 = vmul.f32 %v124, %v140
    %v148 = vmul.f32 %v125, %v140
    %v149 = vmul.f32 %v126, %v140
    %v150 = vmul.f32 %v127, %v140
    %v151 = vmul.f32 %v128, %v140
    %v152 = vmul.f32 %v129, %v140
    %v153 = vmul.f32 %v130, %v140
    %v154 = vmul.f32 %v131, %v140
    %v155 = vmul.f32 %v132, %v140
    %v156 = vmul.f32 %v133, %v140
    %v157 = vmul.f32 %v134, %v140
    %v158 = vld [vmem:[%s2] sm:$0x1]
    %v160 = vlaneseq
    %v161 = vshrl.u32 %v160, 7
    %v162 = vsub.s32 0, %v161
    %v163 = vrot.slane %v158, %v162
    %v165 = vadd.f32 %v142, %v163
    %v166 = vadd.f32 %v143, %v163
    %v167 = vadd.f32 %v144, %v163
    %v168 = vadd.f32 %v145, %v163
    %v169 = vadd.f32 %v146, %v163
    %v170 = vadd.f32 %v147, %v163
    %v171 = vadd.f32 %v148, %v163
    %v172 = vadd.f32 %v149, %v163
    %v173 = vadd.f32 %v150, %v163
    %v174 = vadd.f32 %v151, %v163
    %v175 = vadd.f32 %v152, %v163
    %v176 = vadd.f32 %v153, %v163
    %v177 = vadd.f32 %v154, %v163
    %v178 = vadd.f32 %v155, %v163
    %v179 = vadd.f32 %v156, %v163
    %v180 = vadd.f32 %v157, %v163
    %v181 = vld [vmem:[#allocation2] sm:$0xff]
    %v182 = vld [vmem:[#allocation2 + $0x8] sm:$0xff]
    %v183 = vld [vmem:[#allocation2 + $0x10] sm:$0xff]
    %v184 = vld [vmem:[#allocation2 + $0x18] sm:$0xff]
    %v185 = vld [vmem:[#allocation2 + $0x20] sm:$0xff]
    %v186 = vld [vmem:[#allocation2 + $0x28] sm:$0xff]
    %v187 = vld [vmem:[#allocation2 + $0x30] sm:$0xff]
    %v188 = vld [vmem:[#allocation2 + $0x38] sm:$0xff]
    %v189 = vld [vmem:[#allocation2 + $0x40] sm:$0xff]
    %v190 = vld [vmem:[#allocation2 + $0x48] sm:$0xff]
    %v191 = vld [vmem:[#allocation2 + $0x50] sm:$0xff]
    %v192 = vld [vmem:[#allocation2 + $0x58] sm:$0xff]
    %v193 = vld [vmem:[#allocation2 + $0x60] sm:$0xff]
    %v194 = vld [vmem:[#allocation2 + $0x68] sm:$0xff]
    %v195 = vld [vmem:[#allocation2 + $0x70] sm:$0xff]
    %v196 = vld [vmem:[#allocation2 + $0x78] sm:$0xff]
    %v197 = vld [vmem:[%s4] sm:$0x1]
    %v199 = vlaneseq
    %v200 = vshrl.u32 %v199, 7
    %v201 = vsub.s32 0, %v200
    %v202 = vrot.slane %v197, %v201
    %v204 = vmul.f32 %v181, %v202
    %v205 = vmul.f32 %v182, %v202
    %v206 = vmul.f32 %v183, %v202
    %v207 = vmul.f32 %v184, %v202
    %v208 = vmul.f32 %v185, %v202
    %v209 = vmul.f32 %v186, %v202
    %v210 = vmul.f32 %v187, %v202
    %v211 = vmul.f32 %v188, %v202
    %v212 = vmul.f32 %v189, %v202
    %v213 = vmul.f32 %v190, %v202
    %v214 = vmul.f32 %v191, %v202
    %v215 = vmul.f32 %v192, %v202
    %v216 = vmul.f32 %v193, %v202
    %v217 = vmul.f32 %v194, %v202
    %v218 = vmul.f32 %v195, %v202
    %v219 = vmul.f32 %v196, %v202
    %v220 = vadd.f32 %v165, %v204
    %v221 = vadd.f32 %v166, %v205
    %v222 = vadd.f32 %v167, %v206
    %v223 = vadd.f32 %v168, %v207
    %v224 = vadd.f32 %v169, %v208
    %v225 = vadd.f32 %v170, %v209
    %v226 = vadd.f32 %v171, %v210
    %v227 = vadd.f32 %v172, %v211
    %v228 = vadd.f32 %v173, %v212
    %v229 = vadd.f32 %v174, %v213
    %v230 = vadd.f32 %v175, %v214
    %v231 = vadd.f32 %v176, %v215
    %v232 = vadd.f32 %v177, %v216
    %v233 = vadd.f32 %v178, %v217
    %v234 = vadd.f32 %v179, %v218
    %v235 = vadd.f32 %v180, %v219
    %v236 = vld [vmem:[%s5] sm:$0x1]
    %v238 = vlaneseq
    %v239 = vshrl.u32 %v238, 7
    %v240 = vsub.s32 0, %v239
    %v241 = vrot.slane %v236, %v240
    %v243 = vadd.f32 %v220, %v241
    %v244 = vadd.f32 %v221, %v241
    %v245 = vadd.f32 %v222, %v241
    %v246 = vadd.f32 %v223, %v241
    %v247 = vadd.f32 %v224, %v241
    %v248 = vadd.f32 %v225, %v241
    %v249 = vadd.f32 %v226, %v241
    %v250 = vadd.f32 %v227, %v241
    %v251 = vadd.f32 %v228, %v241
    %v252 = vadd.f32 %v229, %v241
    %v253 = vadd.f32 %v230, %v241
    %v254 = vadd.f32 %v231, %v241
    %v255 = vadd.f32 %v232, %v241
    %v256 = vadd.f32 %v233, %v241
    %v257 = vadd.f32 %v234, %v241
    %v258 = vadd.f32 %v235, %v241
    %v259 = vmax.f32 %v243, 0.0
    %v260 = vmax.f32 %v244, 0.0
    %v261 = vmax.f32 %v245, 0.0
    %v262 = vmax.f32 %v246, 0.0
    %v263 = vmax.f32 %v247, 0.0
    %v264 = vmax.f32 %v248, 0.0
    %v265 = vmax.f32 %v249, 0.0
    %v266 = vmax.f32 %v250, 0.0
    %v267 = vmax.f32 %v251, 0.0
    %v268 = vmax.f32 %v252, 0.0
    %v269 = vmax.f32 %v253, 0.0
    %v270 = vmax.f32 %v254, 0.0
    %v271 = vmax.f32 %v255, 0.0
    %v272 = vmax.f32 %v256, 0.0
    %v273 = vmax.f32 %v257, 0.0
    %v274 = vmax.f32 %v258, 0.0
    %275 = vst [vmem:[%s6] sm:$0xff] %v259
    %276 = vst [vmem:[%s6 + $0x8] sm:$0xff] %v260
    %277 = vst [vmem:[%s6 + $0x10] sm:$0xff] %v261
    %278 = vst [vmem:[%s6 + $0x18] sm:$0xff] %v262
    %279 = vst [vmem:[%s6 + $0x20] sm:$0xff] %v263
    %280 = vst [vmem:[%s6 + $0x28] sm:$0xff] %v264
    %281 = vst [vmem:[%s6 + $0x30] sm:$0xff] %v265
    %282 = vst [vmem:[%s6 + $0x38] sm:$0xff] %v266
    %283 = vst [vmem:[%s6 + $0x40] sm:$0xff] %v267
    %284 = vst [vmem:[%s6 + $0x48] sm:$0xff] %v268
    %285 = vst [vmem:[%s6 + $0x50] sm:$0xff] %v269
    %286 = vst [vmem:[%s6 + $0x58] sm:$0xff] %v270
    %287 = vst [vmem:[%s6 + $0x60] sm:$0xff] %v271
    %288 = vst [vmem:[%s6 + $0x68] sm:$0xff] %v272
    %289 = vst [vmem:[%s6 + $0x70] sm:$0xff] %v273
    %290 = vst [vmem:[%s6 + $0x78] sm:$0xff] %v274
    // Predicated region
    $region64: #{basic_block_forward.7} parent=1 // pred_check
      _
    $region65: #{basic_block_forward.7} parent=1 // pred_check_branch
      %292 = sbr.rel (0) target = $region67
    $region66: #{basic_block_forward.7} parent=1 // pred_region
      _
    $region67: #{basic_block_forward.7} parent=1 // pred_fallthru
      _
    // Predicated region
    $region68: #{basic_block_forward.7} parent=1 // pred_check
      _
    $region69: #{basic_block_forward.7} parent=1 // pred_check_branch
      %294 = sbr.rel (0) target = $region71
    $region70: #{basic_block_forward.7} parent=1 // pred_region
      _
    $region71: #{basic_block_forward.7} parent=1 // pred_fallthru
      _

// kernel: basic_block_forward.4
$region0: #{basic_block_forward.4}
  #allocation0 [shape = 'u32[]', space=smem, size = 0x4, offset = 0x4, fixed_abs, tag = 'smem constant byte address 0x4 - core index']
  #allocation1 [shape = 'u32[144,128]{1,0:T(1,128)}', space=vmem, size = 0x12000, scoped, tag = 'internal scratch']
  %s0 = inlined_call_operand.vmem [shape: bf16[128,128], index: 0, kind: input, shape index: {}]
  %s1 = inlined_call_operand.vmem [shape: bf16[128,256], index: 1, kind: input, shape index: {}]
  %s2 = inlined_call_operand.vmem [shape: f32[128,256], index: 2, kind: output, shape index: {0}]
  %s3 = inlined_call_operand.vmem [shape: f32[1,256], index: 3, kind: output, shape index: {1}]
  %s4 = inlined_call_operand.vmem [shape: f32[1,256], index: 4, kind: output, shape index: {2}]
  %5 = xla_tuple %s2, %s3, %s4
  %s6 = sld [smem:[#allocation0]]
  $region38: #{basic_block_forward.4} parent=0
    _
  %s8 = ssub.s32 1, %s6
  %s9 = scalar_select 0, %s8, %s6
  // Predicated region
  $region2: #{basic_block_forward.4} parent=0 // pred_check
    _
  $region3: #{basic_block_forward.4} parent=0 // pred_check_branch
    %11 = sbr.rel (0) target = $region5
  $region4: #{basic_block_forward.4} parent=0 // pred_region
    _
  $region5: #{basic_block_forward.4} parent=0 // pred_fallthru
    _
  // Predicated region
  $region6: #{basic_block_forward.4} parent=0 // pred_check
    _
  $region7: #{basic_block_forward.4} parent=0 // pred_check_branch
    %13 = sbr.rel (0) target = $region9
  $region8: #{basic_block_forward.4} parent=0 // pred_region
    _
  $region9: #{basic_block_forward.4} parent=0 // pred_fallthru
    _
  %p15 = scmp.eq.s32.totalorder 0, 0
  // Predicated region
  $region10: #{basic_block_forward.4} parent=0 // pred_check
    %p16 = pneg %p15
  $region11: #{basic_block_forward.4} parent=0 // pred_check_branch
    %18 = sbr.rel (%p16) target = $region13
  $region12: #{basic_block_forward.4} parent=0 // pred_region
    %v19 = vlaneseq
    %vm20 = vcmp.ge.s32.totalorder %v19, 0
    %vm21 = vcmp.lt.s32.totalorder %v19, 256
    %vm22 = vmand %vm20, %vm21
    %23 = vst.msk [vmem:[%s3] sm:$0x3] %vm22, 0.0
    %24 = vst.msk [vmem:[%s4] sm:$0x3] %vm22, 0.0
  $region13: #{basic_block_forward.4} parent=0 // pred_fallthru
    _
  %v25 = vld [vmem:[%s0] sm:$0xf]
  %v26 = vld [vmem:[%s0 + $0x4] sm:$0xf]
  %v27 = vld [vmem:[%s0 + $0x8] sm:$0xf]
  %v28 = vld [vmem:[%s0 + $0xc] sm:$0xf]
  %v29 = vld [vmem:[%s0 + $0x10] sm:$0xf]
  %v30 = vld [vmem:[%s0 + $0x14] sm:$0xf]
  %v31 = vld [vmem:[%s0 + $0x18] sm:$0xf]
  %v32 = vld [vmem:[%s0 + $0x1c] sm:$0xf]
  %v33 = vld [vmem:[%s0 + $0x20] sm:$0xf]
  %v34 = vld [vmem:[%s0 + $0x24] sm:$0xf]
  %v35 = vld [vmem:[%s0 + $0x28] sm:$0xf]
  %v36 = vld [vmem:[%s0 + $0x2c] sm:$0xf]
  %v37 = vld [vmem:[%s0 + $0x30] sm:$0xf]
  %v38 = vld [vmem:[%s0 + $0x34] sm:$0xf]
  %v39 = vld [vmem:[%s0 + $0x38] sm:$0xf]
  %v40 = vld [vmem:[%s0 + $0x3c] sm:$0xf]
  %v41 = vld [vmem:[%s1] sm:$0xff]
  %v42 = vld [vmem:[%s1 + $0x8] sm:$0xff]
  %v43 = vld [vmem:[%s1 + $0x10] sm:$0xff]
  %v44 = vld [vmem:[%s1 + $0x18] sm:$0xff]
  %v45 = vld [vmem:[%s1 + $0x20] sm:$0xff]
  %v46 = vld [vmem:[%s1 + $0x28] sm:$0xff]
  %v47 = vld [vmem:[%s1 + $0x30] sm:$0xff]
  %v48 = vld [vmem:[%s1 + $0x38] sm:$0xff]
  %v49 = vld [vmem:[%s1 + $0x40] sm:$0xff]
  %v50 = vld [vmem:[%s1 + $0x48] sm:$0xff]
  %v51 = vld [vmem:[%s1 + $0x50] sm:$0xff]
  %v52 = vld [vmem:[%s1 + $0x58] sm:$0xff]
  %v53 = vld [vmem:[%s1 + $0x60] sm:$0xff]
  %v54 = vld [vmem:[%s1 + $0x68] sm:$0xff]
  %v55 = vld [vmem:[%s1 + $0x70] sm:$0xff]
  %v56 = vld [vmem:[%s1 + $0x78] sm:$0xff]
  %v73 = vunpack.c.l.b16 %v25
  %v74 = vunpack.c.l.b16 %v26
  %v75 = vunpack.c.l.b16 %v27
  %v76 = vunpack.c.l.b16 %v28
  %v77 = vunpack.c.l.b16 %v29
  %v78 = vunpack.c.l.b16 %v30
  %v79 = vunpack.c.l.b16 %v31
  %v80 = vunpack.c.l.b16 %v32
  %v81 = vunpack.c.l.b16 %v33
  %v82 = vunpack.c.l.b16 %v34
  %v83 = vunpack.c.l.b16 %v35
  %v84 = vunpack.c.l.b16 %v36
  %v85 = vunpack.c.l.b16 %v37
  %v86 = vunpack.c.l.b16 %v38
  %v87 = vunpack.c.l.b16 %v39
  %v88 = vunpack.c.l.b16 %v40
  %v89 = vpack.c.b16 %v74, %v73
  %v90 = vpack.c.b16 %v76, %v75
  %v91 = vpack.c.b16 %v78, %v77
  %v92 = vpack.c.b16 %v80, %v79
  %v93 = vpack.c.b16 %v82, %v81
  %v94 = vpack.c.b16 %v84, %v83
  %v95 = vpack.c.b16 %v86, %v85
  %v96 = vpack.c.b16 %v88, %v87
  %v121 = vunpack.c.l.b16 %v41
  %v122 = vunpack.c.h.b16 %v41
  %v123 = vunpack.c.l.b16 %v42
  %v124 = vunpack.c.h.b16 %v42
  %v125 = vunpack.c.l.b16 %v43
  %v126 = vunpack.c.h.b16 %v43
  %v127 = vunpack.c.l.b16 %v44
  %v128 = vunpack.c.h.b16 %v44
  %v129 = vunpack.c.l.b16 %v45
  %v130 = vunpack.c.h.b16 %v45
  %v131 = vunpack.c.l.b16 %v46
  %v132 = vunpack.c.h.b16 %v46
  %v133 = vunpack.c.l.b16 %v47
  %v134 = vunpack.c.h.b16 %v47
  %v135 = vunpack.c.l.b16 %v48
  %v136 = vunpack.c.h.b16 %v48
  %v137 = vunpack.c.l.b16 %v49
  %v138 = vunpack.c.h.b16 %v49
  %v139 = vunpack.c.l.b16 %v50
  %v140 = vunpack.c.h.b16 %v50
  %v141 = vunpack.c.l.b16 %v51
  %v142 = vunpack.c.h.b16 %v51
  %v143 = vunpack.c.l.b16 %v52
  %v144 = vunpack.c.h.b16 %v52
  %v145 = vunpack.c.l.b16 %v53
  %v146 = vunpack.c.h.b16 %v53
  %v147 = vunpack.c.l.b16 %v54
  %v148 = vunpack.c.h.b16 %v54
  %v149 = vunpack.c.l.b16 %v55
  %v150 = vunpack.c.h.b16 %v55
  %v151 = vunpack.c.l.b16 %v56
  %v152 = vunpack.c.h.b16 %v56
  %v153 = vpack.c.b16 %v123, %v121
  %v154 = vpack.c.b16 %v124, %v122
  %v155 = vpack.c.b16 %v127, %v125
  %v156 = vpack.c.b16 %v128, %v126
  %v157 = vpack.c.b16 %v131, %v129
  %v158 = vpack.c.b16 %v132, %v130
  %v159 = vpack.c.b16 %v135, %v133
  %v160 = vpack.c.b16 %v136, %v134
  %v161 = vpack.c.b16 %v139, %v137
  %v162 = vpack.c.b16 %v140, %v138
  %v163 = vpack.c.b16 %v143, %v141
  %v164 = vpack.c.b16 %v144, %v142
  %v165 = vpack.c.b16 %v147, %v145
  %v166 = vpack.c.b16 %v148, %v146
  %v167 = vpack.c.b16 %v151, %v149
  %v168 = vpack.c.b16 %v152, %v150
  %185 = vmatprep.subr.bf16.mxu0 %v168
  %186 = vmatpush1.bf16.msra.mxu0 %v167
  %187 = vmatprep.subr.bf16.mxu0 %v166
  %188 = vmatpush1.bf16.msra.mxu0 %v165
  %189 = vmatprep.subr.bf16.mxu0 %v164
  %190 = vmatpush1.bf16.msra.mxu0 %v163
  %191 = vmatprep.subr.bf16.mxu0 %v162
  %192 = vmatpush1.bf16.msra.mxu0 %v161
  %193 = vmatprep.subr.bf16.mxu0 %v160
  %194 = vmatpush1.bf16.msra.mxu0 %v159
  %195 = vmatprep.subr.bf16.mxu0 %v158
  %196 = vmatpush1.bf16.msra.mxu0 %v157
  %197 = vmatprep.subr.bf16.mxu0 %v156
  %198 = vmatpush1.bf16.msra.mxu0 %v155
  %199 = vmatprep.subr.bf16.mxu0 %v154
  %200 = vmatpush1.bf16.msra.mxu0 %v153
  %201 = vmatprep.subr.bf16.mxu0 0
  %202 = vmatpush2.bf16.msra.mxu0 0
  %203 = vmatprep.subr.bf16.mxu0 0
  %204 = vmatpush2.bf16.msra.mxu0 0
  %205 = vmatprep.subr.bf16.mxu0 0
  %206 = vmatpush2.bf16.msra.mxu0 0
  %207 = vmatprep.subr.bf16.mxu0 0
  %208 = vmatpush2.bf16.msra.mxu0 0
  %209 = vmatprep.subr.bf16.mxu0 0
  %210 = vmatpush2.bf16.msra.mxu0 0
  %211 = vmatprep.subr.bf16.mxu0 0
  %212 = vmatpush2.bf16.msra.mxu0 0
  %213 = vmatprep.subr.bf16.mxu0 0
  %214 = vmatpush2.bf16.msra.mxu0 0
  %215 = vmatprep.subr.bf16.mxu0 0
  %216 = vmatpush2.bf16.msra.mxu0 0
  %217 = vmatprep.mubr.bf16.mxu0 0
  %218 = vmatmul.mubr.bf16.gmra.mxu0 %v89
  %v219 = vpop.f32.mrf.mxu0
  %v220 = vadd.f32 0.0, %v219
  %v221 = vpop.f32.mrf.mxu0
  %v222 = vadd.f32 0.0, %v221
  %v223 = vpop.f32.mrf.mxu0
  %v224 = vadd.f32 0.0, %v223
  %v225 = vpop.f32.mrf.mxu0
  %v226 = vadd.f32 0.0, %v225
  %227 = vmatprep.mubr.bf16.mxu0 0
  %228 = vmatmul.mubr.bf16.gmra.mxu0 %v90
  %v229 = vpop.f32.mrf.mxu0
  %v230 = vadd.f32 0.0, %v229
  %v231 = vpop.f32.mrf.mxu0
  %v232 = vadd.f32 0.0, %v231
  %v233 = vpop.f32.mrf.mxu0
  %v234 = vadd.f32 0.0, %v233
  %v235 = vpop.f32.mrf.mxu0
  %v236 = vadd.f32 0.0, %v235
  %237 = vmatprep.mubr.bf16.mxu0 0
  %238 = vmatmul.mubr.bf16.gmra.mxu0 %v91
  %v239 = vpop.f32.mrf.mxu0
  %v240 = vadd.f32 0.0, %v239
  %v241 = vpop.f32.mrf.mxu0
  %v242 = vadd.f32 0.0, %v241
  %v243 = vpop.f32.mrf.mxu0
  %v244 = vadd.f32 0.0, %v243
  %v245 = vpop.f32.mrf.mxu0
  %v246 = vadd.f32 0.0, %v245
  %247 = vmatprep.mubr.bf16.mxu0 0
  %248 = vmatmul.mubr.bf16.gmra.mxu0 %v92
  %v249 = vpop.f32.mrf.mxu0
  %v250 = vadd.f32 0.0, %v249
  %v251 = vpop.f32.mrf.mxu0
  %v252 = vadd.f32 0.0, %v251
  %v253 = vpop.f32.mrf.mxu0
  %v254 = vadd.f32 0.0, %v253
  %v255 = vpop.f32.mrf.mxu0
  %v256 = vadd.f32 0.0, %v255
  %257 = vmatprep.mubr.bf16.mxu0 0
  %258 = vmatmul.mubr.bf16.gmra.mxu0 %v93
  %v259 = vpop.f32.mrf.mxu0
  %v260 = vadd.f32 0.0, %v259
  %v261 = vpop.f32.mrf.mxu0
  %v262 = vadd.f32 0.0, %v261
  %v263 = vpop.f32.mrf.mxu0
  %v264 = vadd.f32 0.0, %v263
  %v265 = vpop.f32.mrf.mxu0
  %v266 = vadd.f32 0.0, %v265
  %267 = vmatprep.mubr.bf16.mxu0 0
  %268 = vmatmul.mubr.bf16.gmra.mxu0 %v94
  %v269 = vpop.f32.mrf.mxu0
  %v270 = vadd.f32 0.0, %v269
  %v271 = vpop.f32.mrf.mxu0
  %v272 = vadd.f32 0.0, %v271
  %v273 = vpop.f32.mrf.mxu0
  %v274 = vadd.f32 0.0, %v273
  %v275 = vpop.f32.mrf.mxu0
  %v276 = vadd.f32 0.0, %v275
  %277 = vmatprep.mubr.bf16.mxu0 0
  %278 = vmatmul.mubr.bf16.gmra.mxu0 %v95
  %v279 = vpop.f32.mrf.mxu0
  %v280 = vadd.f32 0.0, %v279
  %v281 = vpop.f32.mrf.mxu0
  %v282 = vadd.f32 0.0, %v281
  %v283 = vpop.f32.mrf.mxu0
  %v284 = vadd.f32 0.0, %v283
  %v285 = vpop.f32.mrf.mxu0
  %v286 = vadd.f32 0.0, %v285
  %287 = vmatprep.mubr.bf16.mxu0 0
  %288 = vmatmul.mubr.bf16.gmra.mxu0 %v96
  %v289 = vpop.f32.mrf.mxu0
  %v290 = vadd.f32 0.0, %v289
  %v291 = vpop.f32.mrf.mxu0
  %v292 = vadd.f32 0.0, %v291
  %v293 = vpop.f32.mrf.mxu0
  %v294 = vadd.f32 0.0, %v293
  %v295 = vpop.f32.mrf.mxu0
  %v296 = vadd.f32 0.0, %v295
  %297 = vdwg.mxu0
  %298 = vst [vmem:[%s2] sm:$0xff] %v220
  %299 = vst [vmem:[%s2 + $0x8] sm:$0xff] %v222
  %300 = vst [vmem:[%s2 + $0x10] sm:$0xff] %v224
  %301 = vst [vmem:[%s2 + $0x18] sm:$0xff] %v226
  %302 = vst [vmem:[%s2 + $0x20] sm:$0xff] %v230
  %303 = vst [vmem:[%s2 + $0x28] sm:$0xff] %v232
  %304 = vst [vmem:[%s2 + $0x30] sm:$0xff] %v234
  %305 = vst [vmem:[%s2 + $0x38] sm:$0xff] %v236
  %306 = vst [vmem:[%s2 + $0x40] sm:$0xff] %v240
  %307 = vst [vmem:[%s2 + $0x48] sm:$0xff] %v242
  %308 = vst [vmem:[%s2 + $0x50] sm:$0xff] %v244
  %309 = vst [vmem:[%s2 + $0x58] sm:$0xff] %v246
  %310 = vst [vmem:[%s2 + $0x60] sm:$0xff] %v250
  %311 = vst [vmem:[%s2 + $0x68] sm:$0xff] %v252
  %312 = vst [vmem:[%s2 + $0x70] sm:$0xff] %v254
  %313 = vst [vmem:[%s2 + $0x78] sm:$0xff] %v256
  %314 = vst [vmem:[%s2 + $0x80] sm:$0xff] %v260
  %315 = vst [vmem:[%s2 + $0x88] sm:$0xff] %v262
  %316 = vst [vmem:[%s2 + $0x90] sm:$0xff] %v264
  %317 = vst [vmem:[%s2 + $0x98] sm:$0xff] %v266
  %318 = vst [vmem:[%s2 + $0xa0] sm:$0xff] %v270
  %319 = vst [vmem:[%s2 + $0xa8] sm:$0xff] %v272
  %320 = vst [vmem:[%s2 + $0xb0] sm:$0xff] %v274
  %321 = vst [vmem:[%s2 + $0xb8] sm:$0xff] %v276
  %322 = vst [vmem:[%s2 + $0xc0] sm:$0xff] %v280
  %323 = vst [vmem:[%s2 + $0xc8] sm:$0xff] %v282
  %324 = vst [vmem:[%s2 + $0xd0] sm:$0xff] %v284
  %325 = vst [vmem:[%s2 + $0xd8] sm:$0xff] %v286
  %326 = vst [vmem:[%s2 + $0xe0] sm:$0xff] %v290
  %327 = vst [vmem:[%s2 + $0xe8] sm:$0xff] %v292
  %328 = vst [vmem:[%s2 + $0xf0] sm:$0xff] %v294
  %329 = vst [vmem:[%s2 + $0xf8] sm:$0xff] %v296
  %v330 = vld [vmem:[%s3] sm:$0x3]
  %v331 = vadd.f32 %v220, %v224
  %v332 = vadd.f32 %v331, %v230
  %v333 = vadd.f32 %v332, %v234
  %v334 = vadd.f32 %v333, %v240
  %v335 = vadd.f32 %v334, %v244
  %v336 = vadd.f32 %v335, %v250
  %v337 = vadd.f32 %v336, %v254
  %v338 = vadd.f32 %v337, %v260
  %v339 = vadd.f32 %v338, %v264
  %v340 = vadd.f32 %v339, %v270
  %v341 = vadd.f32 %v340, %v274
  %v342 = vadd.f32 %v341, %v280
  %v343 = vadd.f32 %v342, %v284
  %v344 = vadd.f32 %v343, %v290
  %v345 = vadd.f32 %v344, %v294
  %v346 = vrot.slane %v345, 4
  %v347 = vadd.f32 %v345, %v346
  %v348 = vrot.slane %v347, 2
  %v349 = vadd.f32 %v347, %v348
  %v350 = vrot.slane %v349, 1
  %v351 = vadd.f32 %v349, %v350
  %v352 = vadd.f32 %v222, %v226
  %v353 = vadd.f32 %v352, %v232
  %v354 = vadd.f32 %v353, %v236
  %v355 = vadd.f32 %v354, %v242
  %v356 = vadd.f32 %v355, %v246
  %v357 = vadd.f32 %v356, %v252
  %v358 = vadd.f32 %v357, %v256
  %v359 = vadd.f32 %v358, %v262
  %v360 = vadd.f32 %v359, %v266
  %v361 = vadd.f32 %v360, %v272
  %v362 = vadd.f32 %v361, %v276
  %v363 = vadd.f32 %v362, %v282
  %v364 = vadd.f32 %v363, %v286
  %v365 = vadd.f32 %v364, %v292
  %v366 = vadd.f32 %v365, %v296
  %v367 = vrot.slane %v366, 4
  %v368 = vadd.f32 %v366, %v367
  %v369 = vrot.slane %v368, 2
  %v370 = vadd.f32 %v368, %v369
  %v371 = vrot.slane %v370, 1
  %v372 = vadd.f32 %v370, %v371
  %v375 = vcombine.low %v351, %v372
  %v377 = vunpack.c.l.s4 1966171168
  %v378 = vunpack.c.0.s8 %v377
  %v379 = vlaneseq
  %v380 = vshrl.u32 %v379, 7
  %v381 = vsub.s32 %v378, %v380
  %v382 = vrot.slane %v375, %v381
  %v384 = vunpack.c.l.s4 1966171168
  %v385 = vunpack.c.0.s8 %v384
  %v386 = vlaneseq
  %v387 = vshrl.u32 %v386, 7
  %v388 = vsub.s32 %v385, %v387
  %v389 = vrot.slane %v382, %v388
  %v391 = vadd.f32 %v330, %v389
  %v392 = vlaneseq
  %vm393 = vcmp.ge.s32.totalorder %v392, 0
  %vm394 = vcmp.lt.s32.totalorder %v392, 256
  %vm395 = vmand %vm393, %vm394
  %396 = vst.msk [vmem:[%s3] sm:$0x3] %vm395, %v391
  %v397 = vld [vmem:[%s4] sm:$0x3]
  %v398 = vmul.f32 %v220, %v220
  %v399 = vmul.f32 %v222, %v222
  %v400 = vmul.f32 %v224, %v224
  %v401 = vmul.f32 %v226, %v226
  %v402 = vmul.f32 %v230, %v230
  %v403 = vmul.f32 %v232, %v232
  %v404 = vmul.f32 %v234, %v234
  %v405 = vmul.f32 %v236, %v236
  %v406 = vmul.f32 %v240, %v240
  %v407 = vmul.f32 %v242, %v242
  %v408 = vmul.f32 %v244, %v244
  %v409 = vmul.f32 %v246, %v246
  %v410 = vmul.f32 %v250, %v250
  %v411 = vmul.f32 %v252, %v252
  %v412 = vmul.f32 %v254, %v254
  %v413 = vmul.f32 %v256, %v256
  %v414 = vmul.f32 %v260, %v260
  %v415 = vmul.f32 %v262, %v262
  %v416 = vmul.f32 %v264, %v264
  %v417 = vmul.f32 %v266, %v266
  %v418 = vmul.f32 %v270, %v270
  %v419 = vmul.f32 %v272, %v272
  %v420 = vmul.f32 %v274, %v274
  %v421 = vmul.f32 %v276, %v276
  %v422 = vmul.f32 %v280, %v280
  %v423 = vmul.f32 %v282, %v282
  %v424 = vmul.f32 %v284, %v284
  %v425 = vmul.f32 %v286, %v286
  %v426 = vmul.f32 %v290, %v290
  %v427 = vmul.f32 %v292, %v292
  %v428 = vmul.f32 %v294, %v294
  %v429 = vmul.f32 %v296, %v296
  %v430 = vadd.f32 %v398, %v400
  %v431 = vadd.f32 %v430, %v402
  %v432 = vadd.f32 %v431, %v404
  %v433 = vadd.f32 %v432, %v406
  %v434 = vadd.f32 %v433, %v408
  %v435 = vadd.f32 %v434, %v410
  %v436 = vadd.f32 %v435, %v412
  %v437 = vadd.f32 %v436, %v414
  %v438 = vadd.f32 %v437, %v416
  %v439 = vadd.f32 %v438, %v418
  %v440 = vadd.f32 %v439, %v420
  %v441 = vadd.f32 %v440, %v422
  %v442 = vadd.f32 %v441, %v424
  %v443 = vadd.f32 %v442, %v426
  %v444 = vadd.f32 %v443, %v428
  %v445 = vrot.slane %v444, 4
  %v446 = vadd.f32 %v444, %v445
  %v447 = vrot.slane %v446, 2
  %v448 = vadd.f32 %v446, %v447
  %v449 = vrot.slane %v448, 1
  %v450 = vadd.f32 %v448, %v449
  %v451 = vadd.f32 %v399, %v401
  %v452 = vadd.f32 %v451, %v403
  %v453 = vadd.f32 %v452, %v405
  %v454 = vadd.f32 %v453, %v407
  %v455 = vadd.f32 %v454, %v409
  %v456 = vadd.f32 %v455, %v411
  %v457 = vadd.f32 %v456, %v413
  %v458 = vadd.f32 %v457, %v415
  %v459 = vadd.f32 %v458, %v417
  %v460 = vadd.f32 %v459, %v419
  %v461 = vadd.f32 %v460, %v421
  %v462 = vadd.f32 %v461, %v423
  %v463 = vadd.f32 %v462, %v425
  %v464 = vadd.f32 %v463, %v427
  %v465 = vadd.f32 %v464, %v429
  %v466 = vrot.slane %v465, 4
  %v467 = vadd.f32 %v465, %v466
  %v468 = vrot.slane %v467, 2
  %v469 = vadd.f32 %v467, %v468
  %v470 = vrot.slane %v469, 1
  %v471 = vadd.f32 %v469, %v470
  %v474 = vcombine.low %v450, %v471
  %v476 = vunpack.c.l.s4 1966171168
  %v477 = vunpack.c.0.s8 %v476
  %v478 = vlaneseq
  %v479 = vshrl.u32 %v478, 7
  %v480 = vsub.s32 %v477, %v479
  %v481 = vrot.slane %v474, %v480
  %v483 = vunpack.c.l.s4 1966171168
  %v484 = vunpack.c.0.s8 %v483
  %v485 = vlaneseq
  %v486 = vshrl.u32 %v485, 7
  %v487 = vsub.s32 %v484, %v486
  %v488 = vrot.slane %v481, %v487
  %v490 = vadd.f32 %v397, %v488
  %491 = vst.msk [vmem:[%s4] sm:$0x3] %vm395, %v490
  // Predicated region
  $region14: #{basic_block_forward.4} parent=0 // pred_check
    _
  $region15: #{basic_block_forward.4} parent=0 // pred_check_branch
    %493 = sbr.rel (0) target = $region17
  $region16: #{basic_block_forward.4} parent=0 // pred_region
    _
  $region17: #{basic_block_forward.4} parent=0 // pred_fallthru
    _
  // Predicated region
  $region18: #{basic_block_forward.4} parent=0 // pred_check
    _
  $region19: #{basic_block_forward.4} parent=0 // pred_check_branch
    %495 = sbr.rel (0) target = $region21
  $region20: #{basic_block_forward.4} parent=0 // pred_region
    _
  $region21: #{basic_block_forward.4} parent=0 // pred_fallthru
    _
  // Predicated region
  $region22: #{basic_block_forward.4} parent=0 // pred_check
    _
  $region23: #{basic_block_forward.4} parent=0 // pred_check_branch
    %497 = sbr.rel (0) target = $region25
  $region24: #{basic_block_forward.4} parent=0 // pred_region
    _
  $region25: #{basic_block_forward.4} parent=0 // pred_fallthru
    _
  // Predicated region
  $region26: #{basic_block_forward.4} parent=0 // pred_check
    _
  $region27: #{basic_block_forward.4} parent=0 // pred_check_branch
    %499 = sbr.rel (0) target = $region29
  $region28: #{basic_block_forward.4} parent=0 // pred_region
    _
  $region29: #{basic_block_forward.4} parent=0 // pred_fallthru
    _
  // Predicated region
  $region30: #{basic_block_forward.4} parent=0 // pred_check
    _
  $region31: #{basic_block_forward.4} parent=0 // pred_check_branch
    %501 = sbr.rel (0) target = $region33
  $region32: #{basic_block_forward.4} parent=0 // pred_region
    _
  $region33: #{basic_block_forward.4} parent=0 // pred_fallthru
    _
  // Predicated region
  $region34: #{basic_block_forward.4} parent=0 // pred_check
    _
  $region35: #{basic_block_forward.4} parent=0 // pred_check_branch
    %503 = sbr.rel (0) target = $region37
  $region36: #{basic_block_forward.4} parent=0 // pred_region
    _
  $region37: #{basic_block_forward.4} parent=0 // pred_fallthru
    _

// kernel: basic_block_forward.6
$region0: #{basic_block_forward.6}
  #allocation0 [shape = 'u32[]', space=smem, size = 0x4, offset = 0x4, fixed_abs, tag = 'smem constant byte address 0x4 - core index']
  #allocation1 [shape = 'u32[144,128]{1,0:T(1,128)}', space=vmem, size = 0x12000, scoped, tag = 'internal scratch']
  %s0 = inlined_call_operand.vmem [shape: bf16[128,128], index: 0, kind: input, shape index: {}]
  %s1 = inlined_call_operand.vmem [shape: bf16[128,128], index: 1, kind: input, shape index: {}]
  %s2 = inlined_call_operand.vmem [shape: f32[128,128], index: 2, kind: output, shape index: {0}]
  %s3 = inlined_call_operand.vmem [shape: f32[1,128], index: 3, kind: output, shape index: {1}]
  %s4 = inlined_call_operand.vmem [shape: f32[1,128], index: 4, kind: output, shape index: {2}]
  %5 = xla_tuple %s2, %s3, %s4
  %s6 = sld [smem:[#allocation0]]
  $region38: #{basic_block_forward.6} parent=0
    _
  %s8 = ssub.s32 1, %s6
  %s9 = scalar_select 0, %s8, %s6
  // Predicated region
  $region2: #{basic_block_forward.6} parent=0 // pred_check
    _
  $region3: #{basic_block_forward.6} parent=0 // pred_check_branch
    %11 = sbr.rel (0) target = $region5
  $region4: #{basic_block_forward.6} parent=0 // pred_region
    _
  $region5: #{basic_block_forward.6} parent=0 // pred_fallthru
    _
  // Predicated region
  $region6: #{basic_block_forward.6} parent=0 // pred_check
    _
  $region7: #{basic_block_forward.6} parent=0 // pred_check_branch
    %13 = sbr.rel (0) target = $region9
  $region8: #{basic_block_forward.6} parent=0 // pred_region
    _
  $region9: #{basic_block_forward.6} parent=0 // pred_fallthru
    _
  %p15 = scmp.eq.s32.totalorder 0, 0
  // Predicated region
  $region10: #{basic_block_forward.6} parent=0 // pred_check
    %p16 = pneg %p15
  $region11: #{basic_block_forward.6} parent=0 // pred_check_branch
    %18 = sbr.rel (%p16) target = $region13
  $region12: #{basic_block_forward.6} parent=0 // pred_region
    %19 = vst [vmem:[%s3] sm:$0x1] 0.0
    %20 = vst [vmem:[%s4] sm:$0x1] 0.0
  $region13: #{basic_block_forward.6} parent=0 // pred_fallthru
    _
  %v21 = vld [vmem:[%s0] sm:$0xf]
  %v22 = vld [vmem:[%s0 + $0x4] sm:$0xf]
  %v23 = vld [vmem:[%s0 + $0x8] sm:$0xf]
  %v24 = vld [vmem:[%s0 + $0xc] sm:$0xf]
  %v25 = vld [vmem:[%s0 + $0x10] sm:$0xf]
  %v26 = vld [vmem:[%s0 + $0x14] sm:$0xf]
  %v27 = vld [vmem:[%s0 + $0x18] sm:$0xf]
  %v28 = vld [vmem:[%s0 + $0x1c] sm:$0xf]
  %v29 = vld [vmem:[%s0 + $0x20] sm:$0xf]
  %v30 = vld [vmem:[%s0 + $0x24] sm:$0xf]
  %v31 = vld [vmem:[%s0 + $0x28] sm:$0xf]
  %v32 = vld [vmem:[%s0 + $0x2c] sm:$0xf]
  %v33 = vld [vmem:[%s0 + $0x30] sm:$0xf]
  %v34 = vld [vmem:[%s0 + $0x34] sm:$0xf]
  %v35 = vld [vmem:[%s0 + $0x38] sm:$0xf]
  %v36 = vld [vmem:[%s0 + $0x3c] sm:$0xf]
  %v37 = vld [vmem:[%s1] sm:$0xf]
  %v38 = vld [vmem:[%s1 + $0x4] sm:$0xf]
  %v39 = vld [vmem:[%s1 + $0x8] sm:$0xf]
  %v40 = vld [vmem:[%s1 + $0xc] sm:$0xf]
  %v41 = vld [vmem:[%s1 + $0x10] sm:$0xf]
  %v42 = vld [vmem:[%s1 + $0x14] sm:$0xf]
  %v43 = vld [vmem:[%s1 + $0x18] sm:$0xf]
  %v44 = vld [vmem:[%s1 + $0x1c] sm:$0xf]
  %v45 = vld [vmem:[%s1 + $0x20] sm:$0xf]
  %v46 = vld [vmem:[%s1 + $0x24] sm:$0xf]
  %v47 = vld [vmem:[%s1 + $0x28] sm:$0xf]
  %v48 = vld [vmem:[%s1 + $0x2c] sm:$0xf]
  %v49 = vld [vmem:[%s1 + $0x30] sm:$0xf]
  %v50 = vld [vmem:[%s1 + $0x34] sm:$0xf]
  %v51 = vld [vmem:[%s1 + $0x38] sm:$0xf]
  %v52 = vld [vmem:[%s1 + $0x3c] sm:$0xf]
  %v69 = vunpack.c.l.b16 %v21
  %v70 = vunpack.c.l.b16 %v22
  %v71 = vunpack.c.l.b16 %v23
  %v72 = vunpack.c.l.b16 %v24
  %v73 = vunpack.c.l.b16 %v25
  %v74 = vunpack.c.l.b16 %v26
  %v75 = vunpack.c.l.b16 %v27
  %v76 = vunpack.c.l.b16 %v28
  %v77 = vunpack.c.l.b16 %v29
  %v78 = vunpack.c.l.b16 %v30
  %v79 = vunpack.c.l.b16 %v31
  %v80 = vunpack.c.l.b16 %v32
  %v81 = vunpack.c.l.b16 %v33
  %v82 = vunpack.c.l.b16 %v34
  %v83 = vunpack.c.l.b16 %v35
  %v84 = vunpack.c.l.b16 %v36
  %v85 = vpack.c.b16 %v70, %v69
  %v86 = vpack.c.b16 %v72, %v71
  %v87 = vpack.c.b16 %v74, %v73
  %v88 = vpack.c.b16 %v76, %v75
  %v89 = vpack.c.b16 %v78, %v77
  %v90 = vpack.c.b16 %v80, %v79
  %v91 = vpack.c.b16 %v82, %v81
  %v92 = vpack.c.b16 %v84, %v83
  %v117 = vunpack.c.l.b16 %v37
  %v118 = vunpack.c.l.b16 %v38
  %v119 = vunpack.c.l.b16 %v39
  %v120 = vunpack.c.l.b16 %v40
  %v121 = vunpack.c.l.b16 %v41
  %v122 = vunpack.c.l.b16 %v42
  %v123 = vunpack.c.l.b16 %v43
  %v124 = vunpack.c.l.b16 %v44
  %v125 = vunpack.c.l.b16 %v45
  %v126 = vunpack.c.l.b16 %v46
  %v127 = vunpack.c.l.b16 %v47
  %v128 = vunpack.c.l.b16 %v48
  %v129 = vunpack.c.l.b16 %v49
  %v130 = vunpack.c.l.b16 %v50
  %v131 = vunpack.c.l.b16 %v51
  %v132 = vunpack.c.l.b16 %v52
  %v133 = vpack.c.b16 %v118, %v117
  %v134 = vpack.c.b16 %v120, %v119
  %v135 = vpack.c.b16 %v122, %v121
  %v136 = vpack.c.b16 %v124, %v123
  %v137 = vpack.c.b16 %v126, %v125
  %v138 = vpack.c.b16 %v128, %v127
  %v139 = vpack.c.b16 %v130, %v129
  %v140 = vpack.c.b16 %v132, %v131
  %149 = vmatprep.subr.bf16.mxu0 0
  %150 = vmatpush1.bf16.msra.mxu0 %v140
  %151 = vmatprep.subr.bf16.mxu0 0
  %152 = vmatpush1.bf16.msra.mxu0 %v139
  %153 = vmatprep.subr.bf16.mxu0 0
  %154 = vmatpush1.bf16.msra.mxu0 %v138
  %155 = vmatprep.subr.bf16.mxu0 0
  %156 = vmatpush1.bf16.msra.mxu0 %v137
  %157 = vmatprep.subr.bf16.mxu0 0
  %158 = vmatpush1.bf16.msra.mxu0 %v136
  %159 = vmatprep.subr.bf16.mxu0 0
  %160 = vmatpush1.bf16.msra.mxu0 %v135
  %161 = vmatprep.subr.bf16.mxu0 0
  %162 = vmatpush1.bf16.msra.mxu0 %v134
  %163 = vmatprep.subr.bf16.mxu0 0
  %164 = vmatpush1.bf16.msra.mxu0 %v133
  %165 = vmatprep.subr.bf16.mxu0 0
  %166 = vmatpush2.bf16.msra.mxu0 0
  %167 = vmatprep.subr.bf16.mxu0 0
  %168 = vmatpush2.bf16.msra.mxu0 0
  %169 = vmatprep.subr.bf16.mxu0 0
  %170 = vmatpush2.bf16.msra.mxu0 0
  %171 = vmatprep.subr.bf16.mxu0 0
  %172 = vmatpush2.bf16.msra.mxu0 0
  %173 = vmatprep.subr.bf16.mxu0 0
  %174 = vmatpush2.bf16.msra.mxu0 0
  %175 = vmatprep.subr.bf16.mxu0 0
  %176 = vmatpush2.bf16.msra.mxu0 0
  %177 = vmatprep.subr.bf16.mxu0 0
  %178 = vmatpush2.bf16.msra.mxu0 0
  %179 = vmatprep.subr.bf16.mxu0 0
  %180 = vmatpush2.bf16.msra.mxu0 0
  %181 = vmatprep.mubr.bf16.mxu0 0
  %182 = vmatmul.mubr.bf16.gmra.mxu0 %v85
  %v183 = vpop.f32.mrf.mxu0
  %v184 = vadd.f32 0.0, %v183
  %v185 = vpop.f32.mrf.mxu0
  %v186 = vpop.f32.mrf.mxu0
  %v187 = vadd.f32 0.0, %v186
  %v188 = vpop.f32.mrf.mxu0
  %189 = vmatprep.mubr.bf16.mxu0 0
  %190 = vmatmul.mubr.bf16.gmra.mxu0 %v86
  %v191 = vpop.f32.mrf.mxu0
  %v192 = vadd.f32 0.0, %v191
  %v193 = vpop.f32.mrf.mxu0
  %v194 = vpop.f32.mrf.mxu0
  %v195 = vadd.f32 0.0, %v194
  %v196 = vpop.f32.mrf.mxu0
  %197 = vmatprep.mubr.bf16.mxu0 0
  %198 = vmatmul.mubr.bf16.gmra.mxu0 %v87
  %v199 = vpop.f32.mrf.mxu0
  %v200 = vadd.f32 0.0, %v199
  %v201 = vpop.f32.mrf.mxu0
  %v202 = vpop.f32.mrf.mxu0
  %v203 = vadd.f32 0.0, %v202
  %v204 = vpop.f32.mrf.mxu0
  %205 = vmatprep.mubr.bf16.mxu0 0
  %206 = vmatmul.mubr.bf16.gmra.mxu0 %v88
  %v207 = vpop.f32.mrf.mxu0
  %v208 = vadd.f32 0.0, %v207
  %v209 = vpop.f32.mrf.mxu0
  %v210 = vpop.f32.mrf.mxu0
  %v211 = vadd.f32 0.0, %v210
  %v212 = vpop.f32.mrf.mxu0
  %213 = vmatprep.mubr.bf16.mxu0 0
  %214 = vmatmul.mubr.bf16.gmra.mxu0 %v89
  %v215 = vpop.f32.mrf.mxu0
  %v216 = vadd.f32 0.0, %v215
  %v217 = vpop.f32.mrf.mxu0
  %v218 = vpop.f32.mrf.mxu0
  %v219 = vadd.f32 0.0, %v218
  %v220 = vpop.f32.mrf.mxu0
  %221 = vmatprep.mubr.bf16.mxu0 0
  %222 = vmatmul.mubr.bf16.gmra.mxu0 %v90
  %v223 = vpop.f32.mrf.mxu0
  %v224 = vadd.f32 0.0, %v223
  %v225 = vpop.f32.mrf.mxu0
  %v226 = vpop.f32.mrf.mxu0
  %v227 = vadd.f32 0.0, %v226
  %v228 = vpop.f32.mrf.mxu0
  %229 = vmatprep.mubr.bf16.mxu0 0
  %230 = vmatmul.mubr.bf16.gmra.mxu0 %v91
  %v231 = vpop.f32.mrf.mxu0
  %v232 = vadd.f32 0.0, %v231
  %v233 = vpop.f32.mrf.mxu0
  %v234 = vpop.f32.mrf.mxu0
  %v235 = vadd.f32 0.0, %v234
  %v236 = vpop.f32.mrf.mxu0
  %237 = vmatprep.mubr.bf16.mxu0 0
  %238 = vmatmul.mubr.bf16.gmra.mxu0 %v92
  %v239 = vpop.f32.mrf.mxu0
  %v240 = vadd.f32 0.0, %v239
  %v241 = vpop.f32.mrf.mxu0
  %v242 = vpop.f32.mrf.mxu0
  %v243 = vadd.f32 0.0, %v242
  %v244 = vpop.f32.mrf.mxu0
  %245 = vdwg.mxu0
  %246 = vst [vmem:[%s2] sm:$0xff] %v184
  %247 = vst [vmem:[%s2 + $0x8] sm:$0xff] %v187
  %248 = vst [vmem:[%s2 + $0x10] sm:$0xff] %v192
  %249 = vst [vmem:[%s2 + $0x18] sm:$0xff] %v195
  %250 = vst [vmem:[%s2 + $0x20] sm:$0xff] %v200
  %251 = vst [vmem:[%s2 + $0x28] sm:$0xff] %v203
  %252 = vst [vmem:[%s2 + $0x30] sm:$0xff] %v208
  %253 = vst [vmem:[%s2 + $0x38] sm:$0xff] %v211
  %254 = vst [vmem:[%s2 + $0x40] sm:$0xff] %v216
  %255 = vst [vmem:[%s2 + $0x48] sm:$0xff] %v219
  %256 = vst [vmem:[%s2 + $0x50] sm:$0xff] %v224
  %257 = vst [vmem:[%s2 + $0x58] sm:$0xff] %v227
  %258 = vst [vmem:[%s2 + $0x60] sm:$0xff] %v232
  %259 = vst [vmem:[%s2 + $0x68] sm:$0xff] %v235
  %260 = vst [vmem:[%s2 + $0x70] sm:$0xff] %v240
  %261 = vst [vmem:[%s2 + $0x78] sm:$0xff] %v243
  %v262 = vld [vmem:[%s3] sm:$0x1]
  %v263 = vadd.f32 %v184, %v187
  %v264 = vadd.f32 %v263, %v192
  %v265 = vadd.f32 %v264, %v195
  %v266 = vadd.f32 %v265, %v200
  %v267 = vadd.f32 %v266, %v203
  %v268 = vadd.f32 %v267, %v208
  %v269 = vadd.f32 %v268, %v211
  %v270 = vadd.f32 %v269, %v216
  %v271 = vadd.f32 %v270, %v219
  %v272 = vadd.f32 %v271, %v224
  %v273 = vadd.f32 %v272, %v227
  %v274 = vadd.f32 %v273, %v232
  %v275 = vadd.f32 %v274, %v235
  %v276 = vadd.f32 %v275, %v240
  %v277 = vadd.f32 %v276, %v243
  %v278 = vrot.slane %v277, 4
  %v279 = vadd.f32 %v277, %v278
  %v280 = vrot.slane %v279, 2
  %v281 = vadd.f32 %v279, %v280
  %v282 = vrot.slane %v281, 1
  %v283 = vadd.f32 %v281, %v282
  %v284 = vadd.f32 %v262, %v283
  %285 = vst [vmem:[%s3] sm:$0x1] %v284
  %v286 = vld [vmem:[%s4] sm:$0x1]
  %v287 = vmul.f32 %v184, %v184
  %v288 = vmul.f32 %v187, %v187
  %v289 = vmul.f32 %v192, %v192
  %v290 = vmul.f32 %v195, %v195
  %v291 = vmul.f32 %v200, %v200
  %v292 = vmul.f32 %v203, %v203
  %v293 = vmul.f32 %v208, %v208
  %v294 = vmul.f32 %v211, %v211
  %v295 = vmul.f32 %v216, %v216
  %v296 = vmul.f32 %v219, %v219
  %v297 = vmul.f32 %v224, %v224
  %v298 = vmul.f32 %v227, %v227
  %v299 = vmul.f32 %v232, %v232
  %v300 = vmul.f32 %v235, %v235
  %v301 = vmul.f32 %v240, %v240
  %v302 = vmul.f32 %v243, %v243
  %v303 = vadd.f32 %v287, %v288
  %v304 = vadd.f32 %v303, %v289
  %v305 = vadd.f32 %v304, %v290
  %v306 = vadd.f32 %v305, %v291
  %v307 = vadd.f32 %v306, %v292
  %v308 = vadd.f32 %v307, %v293
  %v309 = vadd.f32 %v308, %v294
  %v310 = vadd.f32 %v309, %v295
  %v311 = vadd.f32 %v310, %v296
  %v312 = vadd.f32 %v311, %v297
  %v313 = vadd.f32 %v312, %v298
  %v314 = vadd.f32 %v313, %v299
  %v315 = vadd.f32 %v314, %v300
  %v316 = vadd.f32 %v315, %v301
  %v317 = vadd.f32 %v316, %v302
  %v318 = vrot.slane %v317, 4
  %v319 = vadd.f32 %v317, %v318
  %v320 = vrot.slane %v319, 2
  %v321 = vadd.f32 %v319, %v320
  %v322 = vrot.slane %v321, 1
  %v323 = vadd.f32 %v321, %v322
  %v324 = vadd.f32 %v286, %v323
  %325 = vst [vmem:[%s4] sm:$0x1] %v324
  // Predicated region
  $region14: #{basic_block_forward.6} parent=0 // pred_check
    _
  $region15: #{basic_block_forward.6} parent=0 // pred_check_branch
    %327 = sbr.rel (0) target = $region17
  $region16: #{basic_block_forward.6} parent=0 // pred_region
    _
  $region17: #{basic_block_forward.6} parent=0 // pred_fallthru
    _
  // Predicated region
  $region18: #{basic_block_forward.6} parent=0 // pred_check
    _
  $region19: #{basic_block_forward.6} parent=0 // pred_check_branch
    %329 = sbr.rel (0) target = $region21
  $region20: #{basic_block_forward.6} parent=0 // pred_region
    _
  $region21: #{basic_block_forward.6} parent=0 // pred_fallthru
    _
  // Predicated region
  $region22: #{basic_block_forward.6} parent=0 // pred_check
    _
  $region23: #{basic_block_forward.6} parent=0 // pred_check_branch
    %331 = sbr.rel (0) target = $region25
  $region24: #{basic_block_forward.6} parent=0 // pred_region
    _
  $region25: #{basic_block_forward.6} parent=0 // pred_fallthru
    _
  // Predicated region
  $region26: #{basic_block_forward.6} parent=0 // pred_check
    _
  $region27: #{basic_block_forward.6} parent=0 // pred_check_branch
    %333 = sbr.rel (0) target = $region29
  $region28: #{basic_block_forward.6} parent=0 // pred_region
    _
  $region29: #{basic_block_forward.6} parent=0 // pred_fallthru
    _
  // Predicated region
  $region30: #{basic_block_forward.6} parent=0 // pred_check
    _
  $region31: #{basic_block_forward.6} parent=0 // pred_check_branch
    %335 = sbr.rel (0) target = $region33
  $region32: #{basic_block_forward.6} parent=0 // pred_region
    _
  $region33: #{basic_block_forward.6} parent=0 // pred_fallthru
    _
  // Predicated region
  $region34: #{basic_block_forward.6} parent=0 // pred_check
    _
  $region35: #{basic_block_forward.6} parent=0 // pred_check_branch
    %337 = sbr.rel (0) target = $region37
  $region36: #{basic_block_forward.6} parent=0 // pred_region
    _
  $region37: #{basic_block_forward.6} parent=0 // pred_fallthru
    _

</llo_original>
